<compile_context>
chip_gen: v7x
topology: tpu7x:2x2x1
jax: 0.10.0
libtpu: 0.0.40
codegen_flags: <defaults>
</compile_context>

<pallas_src>
import functools

import jax
import jax.numpy as jnp
from jax import lax
from jax.experimental import pallas as pl
from jax.experimental.pallas import tpu as pltpu


def _compose_wt(w, h1):
    """Fold parameter constraint and compose reflectors into Wt = W^T.

    w : (n, m) raw (unconstrained) weight, n == m.
    Returns (n, n) float32  Wt = H_{m-1} ... H_0  so that out = x @ Wt.
    """
    n, m = w.shape
    w = w.astype(jnp.float32)

    # Constraint folded in-kernel: U = triu(w); U[-1, -1] = h1.
    rows = lax.broadcasted_iota(jnp.int32, (n, m), 0)
    cols = lax.broadcasted_iota(jnp.int32, (n, m), 1)
    U = jnp.where(rows <= cols, w, 0.0)
    U = jnp.where((rows == n - 1) & (cols == m - 1), jnp.float32(h1), U)

    # Hoisted, vectorized coefficients (one VPU mul + one XLU reduce total).
    # Zero-norm row -> identity factor (intentional; matches create_hh_matrix's
    # n2sq == 0 branch, avoids inf/NaN).  Safe divide so NaN can't propagate.
    norms2 = jnp.sum(U * U, axis=1, keepdims=True)                    # (m, 1)
    safe = jnp.where(norms2 > 0.0, norms2, 1.0)
    coeffs = jnp.where(norms2 > 0.0, 2.0 / safe, 0.0)

    # Identity built in-kernel (no extra input DMA).
    ri = lax.broadcasted_iota(jnp.int32, (n, n), 0)
    ci = lax.broadcasted_iota(jnp.int32, (n, n), 1)
    h = (ri == ci).astype(jnp.float32)

    # h <- h (I - c_i u_i u_i^T) for i = m-1 .. 0  =>  h_final = W^T.
    # m is a small compile-time constant here, so a static unroll is fine.
    # For m, n >~ 128 switch to compact-WY (two MXU GEMMs: Wt = I - Y (T Y^T))
    # and/or lax.fori_loop carrying h in a VMEM scratch to bound live ranges.
    for i in reversed(range(m)):
        u = U[i:i + 1, :]                                  # (1, n) static slice
        c = coeffs[i:i + 1, :]                             # (1, 1)
        p = jnp.sum(h * u, axis=1, keepdims=True)          # (n, 1) == h @ u^T
        h = h - (c * p) * u                                # rank-1 update
    return h


def _build_wt_kernel(h1, w_ref, wt_ref):
    """Kernel A: Wt = W^T from the raw weight (constraint folded in)."""
    wt_ref[...] = _compose_wt(w_ref[...], h1)


def _apply_kernel(x_ref, wt_ref, o_ref):
    """Kernel B: out = x @ Wt, one MXU matmul per batch tile."""
    # On v5e, casting both operands to bf16 (f32 accumulation) plus 128-lane
    # block-diag packing would help if the in-kernel slots (not DMA) bind;
    # kept f32 here for exact parity with the PyTorch module.
    o_ref[...] = jnp.dot(
        x_ref[...], wt_ref[...], preferred_element_type=jnp.float32
    ).astype(o_ref.dtype)


def _fused_kernel(h1, w_ref, x_ref, o_ref, wt_ref):
    """Small-B path: build Wt once into VMEM scratch, then matmul, one launch."""
    @pl.when(pl.program_id(0) == 0)
    def _():
        wt_ref[...] = _compose_wt(w_ref[...], h1)

    o_ref[...] = jnp.dot(
        x_ref[...], wt_ref[...], preferred_element_type=jnp.float32
    ).astype(o_ref.dtype)


def _round_up(v, mult):
    return ((v + mult - 1) // mult) * mult


def orthogonal_transform_forward(x, weight, n, m, h1=1.0,
                                 block_b=4096, fuse_batch_threshold=1024):
    """Forward pass of OrthogonalTransform.

    x:      (B, n) float32
    weight: (n, m) float32 unconstrained parameter
    Returns (B, n), dtype of x.  (`bias` is never applied by forward().)
    """
    assert n == m, "OrthogonalTransform._forward only shape-checks when n == m"
    assert abs(h1) == 1.0   # mirrors the module's __init__ assert
    assert weight.shape == (n, m)
    B = x.shape[0]
    out_shape = jax.ShapeDtypeStruct((B, n), x.dtype)

    if B <= fuse_batch_threshold:
        # --- Small-B / latency path: single fused kernel, no Wt round-trip. ---
        vmem_limit = min(
            max(4 * n * n * 4 + 4 * B * n * 4 + (2 << 20), 32 << 20), 64 << 20)
        return pl.pallas_call(
            functools.partial(_fused_kernel, h1),
            grid=(1,),
            in_specs=[
                pl.BlockSpec((n, m), lambda i: (0, 0)),    # raw weight
                pl.BlockSpec((B, n), lambda i: (0, 0)),    # whole (small) batch
            ],
            out_specs=pl.BlockSpec((B, n), lambda i: (0, 0)),
            out_shape=out_shape,
            scratch_shapes=[pltpu.VMEM((n, n), jnp.float32)],   # persistent Wt
            compiler_params=pltpu.CompilerParams(
                # iteration 0 must build Wt first -> cannot be "parallel".
                dimension_semantics=("arbitrary",),
                vmem_limit_bytes=vmem_limit),
        )(weight, x)

    # --- Large-B / throughput path. ---
    # Kernel A: compose reflectors into Wt (n, n), batch independent.
    wt = pl.pallas_call(
        functools.partial(_build_wt_kernel, h1),
        grid=(1,),
        in_specs=[pl.BlockSpec((n, m), lambda i: (0, 0))],
        out_specs=pl.BlockSpec((n, n), lambda i: (0, 0)),
        out_shape=jax.ShapeDtypeStruct((n, n), jnp.float32),
    )(weight)

    # Kernel B: out = x @ Wt.  Batch tile: as large as block_b, but capped near
    # B/2 so the grid always has >= 2 steps (v7x megacore keeps both
    # TensorCores busy); multiple of 8 for sublane alignment.
    tb = min(block_b, max(8, _round_up(-(-B // 2), 8)))
    grid = (pl.cdiv(B, tb),)

    # Wt stays VMEM-resident across the grid (constant index_map, single
    # buffer).  Resident f32 Wt caps out around n ~ 1024-1448 on v7x's 64 MiB
    # VMEM; beyond that, add an N/K grid axis for Wt and/or hold it in bf16.
    vmem_limit = min(
        max(2 * n * n * 4 + 4 * tb * n * 4 + (2 << 20), 32 << 20), 64 << 20)
    return pl.pallas_call(
        _apply_kernel,
        grid=grid,
        in_specs=[
            pl.BlockSpec((tb, n), lambda i: (i, 0)),              # batch tile
            pl.BlockSpec((n, n), lambda i: (0, 0),
                         pipeline_mode=pl.Buffered(1)),           # resident Wt
        ],
        out_specs=pl.BlockSpec((tb, n), lambda i: (i, 0)),
        out_shape=out_shape,
        compiler_params=pltpu.CompilerParams(
            dimension_semantics=("parallel",),     # megacore sharding on v7x
            vmem_limit_bytes=vmem_limit),
    )(x, wt)


def _reference_forward(x, weight, n, m, h1=1.0):
    """Pure-JAX replica of the PyTorch forward (sequential reflections)."""
    U = jnp.triu(weight)
    U = U.at[-1, -1].set(h1)
    h = x.T                                                    # (n, B)
    for i in reversed(range(m)):
        u = U[i]
        n2sq = jnp.dot(u, u)
        coeff = jnp.where(n2sq > 0.0, 2.0 / n2sq, 0.0)
        h = h - coeff * jnp.outer(u, u @ h)
    return h.T


if __name__ == "__main__":
    n = 32          # transform dimensionality
    m = 32          # number of Householder reflectors (full expressiveness)
    h1 = 1.0

    key = jax.random.PRNGKey(0)
    k_w, k_b, k_x = jax.random.split(key, 3)
    weight = jax.random.normal(k_w, (n, m), dtype=jnp.float32)
    bias = jax.random.normal(k_b, (1, n), dtype=jnp.float32)   # unused by forward()

    # --- Small-batch / latency path (single fused pallas_call). ---
    B_small = 8
    x_small = jax.random.normal(k_x, (B_small, n), dtype=jnp.float32)
    out_small = jax.block_until_ready(
        orthogonal_transform_forward(x_small, weight, n, m, h1))

    ref_small = _reference_forward(x_small, weight, n, m, h1)
    assert out_small.shape == (B_small, n) and out_small.dtype == jnp.float32
    # Composed-matrix matmul vs sequential application reassociates f32 ops,
    # so allow a slightly looser tolerance than bit-level agreement.
    assert jnp.allclose(out_small, ref_small, atol=1e-3, rtol=1e-3), "fused path mismatch"
    # Sanity: orthogonal transform preserves row norms.
    assert jnp.allclose(jnp.linalg.norm(out_small, axis=1),
                        jnp.linalg.norm(x_small, axis=1), atol=1e-3)

    # --- Large-batch / throughput path (Wt build + batch-tiled matmul). ---
    B_large = 2048
    x_large = jax.random.normal(jax.random.PRNGKey(1), (B_large, n), dtype=jnp.float32)
    out_large = jax.block_until_ready(
        orthogonal_transform_forward(x_large, weight, n, m, h1))
    ref_large = _reference_forward(x_large, weight, n, m, h1)
    assert out_large.shape == (B_large, n) and out_large.dtype == jnp.float32
    assert jnp.allclose(out_large, ref_large, atol=1e-3, rtol=1e-3), "tiled path mismatch"

    print("KERNEL_OK")
</pallas_src>

<mosaic_0001>
module attributes {stable_mosaic.version = 11 : i64} {
  func.func @_fused_kernel(%arg0: i32, %arg1: memref<32x32xf32, #tpu.memory_space<vmem>>, %arg2: memref<8x32xf32, #tpu.memory_space<vmem>>, %arg3: memref<8x32xf32, #tpu.memory_space<vmem>>, %arg4: memref<32x32xf32, #tpu.memory_space<vmem>>) attributes {dimension_semantics = [#tpu.dimension_semantics<arbitrary>], iteration_bounds = array<i64: 1>, scalar_prefetch = 0 : i64, scratch_operands = 1 : i64, tpu.core_type = #tpu.core_type<tc>, window_params = [{pipeline_mode = #tpu.pipeline_mode<synchronous>, transform_indices = @transform_0, window_bounds = array<i64: 32, 32>}, {pipeline_mode = #tpu.pipeline_mode<synchronous>, transform_indices = @transform_1, window_bounds = array<i64: 8, 32>}, {pipeline_mode = #tpu.pipeline_mode<synchronous>, transform_indices = @transform_2, window_bounds = array<i64: 8, 32>}]} {
    %c0_i32 = arith.constant 0 : i32
    %0 = arith.cmpi eq, %arg0, %c0_i32 : i32
    %1 = arith.extui %0 : i1 to i32
    %c0_i32_0 = arith.constant 0 : i32
    %2 = arith.cmpi ne, %1, %c0_i32_0 : i32
    scf.if %2 {
      %c0_6 = arith.constant 0 : index
      %c0_7 = arith.constant 0 : index
      %7 = vector.load %arg1[%c0_6, %c0_7] : memref<32x32xf32, #tpu.memory_space<vmem>>, vector<32x32xf32>
      %8 = tpu.iota {dimensions = array<i32: 0>} : vector<32x32xi32>
      %9 = tpu.iota {dimensions = array<i32: 1>} : vector<32x32xi32>
      %10 = arith.cmpi sle, %8, %9 : vector<32x32xi32>
      %cst_8 = arith.constant 0.000000e+00 : f32
      %11 = vector.broadcast %cst_8 : f32 to vector<32x32xf32>
      %12 = arith.select %10, %7, %11 : vector<32x32xi1>, vector<32x32xf32>
      %c31_i32 = arith.constant 31 : i32
      %13 = vector.broadcast %c31_i32 : i32 to vector<32x32xi32>
      %14 = arith.cmpi eq, %8, %13 : vector<32x32xi32>
      %c31_i32_9 = arith.constant 31 : i32
      %15 = vector.broadcast %c31_i32_9 : i32 to vector<32x32xi32>
      %16 = arith.cmpi eq, %9, %15 : vector<32x32xi32>
      %17 = arith.andi %14, %16 : vector<32x32xi1>
      %cst_10 = arith.constant 1.000000e+00 : f32
      %18 = vector.broadcast %cst_10 : f32 to vector<32x32xf32>
      %19 = arith.select %17, %18, %12 : vector<32x32xi1>, vector<32x32xf32>
      %20 = arith.mulf %19, %19 : vector<32x32xf32>
      %cst_11 = arith.constant dense<0.000000e+00> : vector<32xf32>
      %21 = vector.multi_reduction <add>, %20, %cst_11 [1] : vector<32x32xf32> to vector<32xf32>
      %22 = vector.shape_cast %21 : vector<32xf32> to vector<32x1xf32>
      %cst_12 = arith.constant 0.000000e+00 : f32
      %23 = vector.broadcast %cst_12 : f32 to vector<32x1xf32>
      %24 = arith.cmpf ogt, %22, %23 : vector<32x1xf32>
      %cst_13 = arith.constant 1.000000e+00 : f32
      %25 = vector.broadcast %cst_13 : f32 to vector<32x1xf32>
      %26 = arith.select %24, %22, %25 : vector<32x1xi1>, vector<32x1xf32>
      %cst_14 = arith.constant 0.000000e+00 : f32
      %27 = vector.broadcast %cst_14 : f32 to vector<32x1xf32>
      %28 = arith.cmpf ogt, %22, %27 : vector<32x1xf32>
      %cst_15 = arith.constant 2.000000e+00 : f32
      %29 = vector.broadcast %cst_15 : f32 to vector<32x1xf32>
      %30 = arith.divf %29, %26 : vector<32x1xf32>
      %cst_16 = arith.constant 0.000000e+00 : f32
      %31 = vector.broadcast %cst_16 : f32 to vector<32x1xf32>
      %32 = arith.select %28, %30, %31 : vector<32x1xi1>, vector<32x1xf32>
      %33 = tpu.iota {dimensions = array<i32: 0>} : vector<32x32xi32>
      %34 = tpu.iota {dimensions = array<i32: 1>} : vector<32x32xi32>
      %35 = arith.cmpi eq, %33, %34 : vector<32x32xi32>
      %36 = arith.extui %35 : vector<32x32xi1> to vector<32x32xi32>
      %37 = arith.sitofp %36 : vector<32x32xi32> to vector<32x32xf32>
      %38 = vector.extract_strided_slice %19 {offsets = [31, 0], sizes = [1, 32], strides = [1, 1]} : vector<32x32xf32> to vector<1x32xf32>
      %39 = vector.extract_strided_slice %32 {offsets = [31, 0], sizes = [1, 1], strides = [1, 1]} : vector<32x1xf32> to vector<1x1xf32>
      %40 = vector.broadcast %38 : vector<1x32xf32> to vector<32x32xf32>
      %41 = arith.mulf %37, %40 : vector<32x32xf32>
      %cst_17 = arith.constant dense<0.000000e+00> : vector<32xf32>
      %42 = vector.multi_reduction <add>, %41, %cst_17 [1] : vector<32x32xf32> to vector<32xf32>
      %43 = vector.shape_cast %42 : vector<32xf32> to vector<32x1xf32>
      %44 = vector.broadcast %39 : vector<1x1xf32> to vector<32x1xf32>
      %45 = arith.mulf %44, %43 : vector<32x1xf32>
      %46 = vector.broadcast %45 : vector<32x1xf32> to vector<32x32xf32>
      %47 = vector.broadcast %38 : vector<1x32xf32> to vector<32x32xf32>
      %48 = arith.mulf %46, %47 : vector<32x32xf32>
      %49 = arith.subf %37, %48 : vector<32x32xf32>
      %50 = vector.extract_strided_slice %19 {offsets = [30, 0], sizes = [1, 32], strides = [1, 1]} : vector<32x32xf32> to vector<1x32xf32>
      %51 = vector.extract_strided_slice %32 {offsets = [30, 0], sizes = [1, 1], strides = [1, 1]} : vector<32x1xf32> to vector<1x1xf32>
      %52 = vector.broadcast %50 : vector<1x32xf32> to vector<32x32xf32>
      %53 = arith.mulf %49, %52 : vector<32x32xf32>
      %cst_18 = arith.constant dense<0.000000e+00> : vector<32xf32>
      %54 = vector.multi_reduction <add>, %53, %cst_18 [1] : vector<32x32xf32> to vector<32xf32>
      %55 = vector.shape_cast %54 : vector<32xf32> to vector<32x1xf32>
      %56 = vector.broadcast %51 : vector<1x1xf32> to vector<32x1xf32>
      %57 = arith.mulf %56, %55 : vector<32x1xf32>
      %58 = vector.broadcast %57 : vector<32x1xf32> to vector<32x32xf32>
      %59 = vector.broadcast %50 : vector<1x32xf32> to vector<32x32xf32>
      %60 = arith.mulf %58, %59 : vector<32x32xf32>
      %61 = arith.subf %49, %60 : vector<32x32xf32>
      %62 = vector.extract_strided_slice %19 {offsets = [29, 0], sizes = [1, 32], strides = [1, 1]} : vector<32x32xf32> to vector<1x32xf32>
      %63 = vector.extract_strided_slice %32 {offsets = [29, 0], sizes = [1, 1], strides = [1, 1]} : vector<32x1xf32> to vector<1x1xf32>
      %64 = vector.broadcast %62 : vector<1x32xf32> to vector<32x32xf32>
      %65 = arith.mulf %61, %64 : vector<32x32xf32>
      %cst_19 = arith.constant dense<0.000000e+00> : vector<32xf32>
      %66 = vector.multi_reduction <add>, %65, %cst_19 [1] : vector<32x32xf32> to vector<32xf32>
      %67 = vector.shape_cast %66 : vector<32xf32> to vector<32x1xf32>
      %68 = vector.broadcast %63 : vector<1x1xf32> to vector<32x1xf32>
      %69 = arith.mulf %68, %67 : vector<32x1xf32>
      %70 = vector.broadcast %69 : vector<32x1xf32> to vector<32x32xf32>
      %71 = vector.broadcast %62 : vector<1x32xf32> to vector<32x32xf32>
      %72 = arith.mulf %70, %71 : vector<32x32xf32>
      %73 = arith.subf %61, %72 : vector<32x32xf32>
      %74 = vector.extract_strided_slice %19 {offsets = [28, 0], sizes = [1, 32], strides = [1, 1]} : vector<32x32xf32> to vector<1x32xf32>
      %75 = vector.extract_strided_slice %32 {offsets = [28, 0], sizes = [1, 1], strides = [1, 1]} : vector<32x1xf32> to vector<1x1xf32>
      %76 = vector.broadcast %74 : vector<1x32xf32> to vector<32x32xf32>
      %77 = arith.mulf %73, %76 : vector<32x32xf32>
      %cst_20 = arith.constant dense<0.000000e+00> : vector<32xf32>
      %78 = vector.multi_reduction <add>, %77, %cst_20 [1] : vector<32x32xf32> to vector<32xf32>
      %79 = vector.shape_cast %78 : vector<32xf32> to vector<32x1xf32>
      %80 = vector.broadcast %75 : vector<1x1xf32> to vector<32x1xf32>
      %81 = arith.mulf %80, %79 : vector<32x1xf32>
      %82 = vector.broadcast %81 : vector<32x1xf32> to vector<32x32xf32>
      %83 = vector.broadcast %74 : vector<1x32xf32> to vector<32x32xf32>
      %84 = arith.mulf %82, %83 : vector<32x32xf32>
      %85 = arith.subf %73, %84 : vector<32x32xf32>
      %86 = vector.extract_strided_slice %19 {offsets = [27, 0], sizes = [1, 32], strides = [1, 1]} : vector<32x32xf32> to vector<1x32xf32>
      %87 = vector.extract_strided_slice %32 {offsets = [27, 0], sizes = [1, 1], strides = [1, 1]} : vector<32x1xf32> to vector<1x1xf32>
      %88 = vector.broadcast %86 : vector<1x32xf32> to vector<32x32xf32>
      %89 = arith.mulf %85, %88 : vector<32x32xf32>
      %cst_21 = arith.constant dense<0.000000e+00> : vector<32xf32>
      %90 = vector.multi_reduction <add>, %89, %cst_21 [1] : vector<32x32xf32> to vector<32xf32>
      %91 = vector.shape_cast %90 : vector<32xf32> to vector<32x1xf32>
      %92 = vector.broadcast %87 : vector<1x1xf32> to vector<32x1xf32>
      %93 = arith.mulf %92, %91 : vector<32x1xf32>
      %94 = vector.broadcast %93 : vector<32x1xf32> to vector<32x32xf32>
      %95 = vector.broadcast %86 : vector<1x32xf32> to vector<32x32xf32>
      %96 = arith.mulf %94, %95 : vector<32x32xf32>
      %97 = arith.subf %85, %96 : vector<32x32xf32>
      %98 = vector.extract_strided_slice %19 {offsets = [26, 0], sizes = [1, 32], strides = [1, 1]} : vector<32x32xf32> to vector<1x32xf32>
      %99 = vector.extract_strided_slice %32 {offsets = [26, 0], sizes = [1, 1], strides = [1, 1]} : vector<32x1xf32> to vector<1x1xf32>
      %100 = vector.broadcast %98 : vector<1x32xf32> to vector<32x32xf32>
      %101 = arith.mulf %97, %100 : vector<32x32xf32>
      %cst_22 = arith.constant dense<0.000000e+00> : vector<32xf32>
      %102 = vector.multi_reduction <add>, %101, %cst_22 [1] : vector<32x32xf32> to vector<32xf32>
      %103 = vector.shape_cast %102 : vector<32xf32> to vector<32x1xf32>
      %104 = vector.broadcast %99 : vector<1x1xf32> to vector<32x1xf32>
      %105 = arith.mulf %104, %103 : vector<32x1xf32>
      %106 = vector.broadcast %105 : vector<32x1xf32> to vector<32x32xf32>
      %107 = vector.broadcast %98 : vector<1x32xf32> to vector<32x32xf32>
      %108 = arith.mulf %106, %107 : vector<32x32xf32>
      %109 = arith.subf %97, %108 : vector<32x32xf32>
      %110 = vector.extract_strided_slice %19 {offsets = [25, 0], sizes = [1, 32], strides = [1, 1]} : vector<32x32xf32> to vector<1x32xf32>
      %111 = vector.extract_strided_slice %32 {offsets = [25, 0], sizes = [1, 1], strides = [1, 1]} : vector<32x1xf32> to vector<1x1xf32>
      %112 = vector.broadcast %110 : vector<1x32xf32> to vector<32x32xf32>
      %113 = arith.mulf %109, %112 : vector<32x32xf32>
      %cst_23 = arith.constant dense<0.000000e+00> : vector<32xf32>
      %114 = vector.multi_reduction <add>, %113, %cst_23 [1] : vector<32x32xf32> to vector<32xf32>
      %115 = vector.shape_cast %114 : vector<32xf32> to vector<32x1xf32>
      %116 = vector.broadcast %111 : vector<1x1xf32> to vector<32x1xf32>
      %117 = arith.mulf %116, %115 : vector<32x1xf32>
      %118 = vector.broadcast %117 : vector<32x1xf32> to vector<32x32xf32>
      %119 = vector.broadcast %110 : vector<1x32xf32> to vector<32x32xf32>
      %120 = arith.mulf %118, %119 : vector<32x32xf32>
      %121 = arith.subf %109, %120 : vector<32x32xf32>
      %122 = vector.extract_strided_slice %19 {offsets = [24, 0], sizes = [1, 32], strides = [1, 1]} : vector<32x32xf32> to vector<1x32xf32>
      %123 = vector.extract_strided_slice %32 {offsets = [24, 0], sizes = [1, 1], strides = [1, 1]} : vector<32x1xf32> to vector<1x1xf32>
      %124 = vector.broadcast %122 : vector<1x32xf32> to vector<32x32xf32>
      %125 = arith.mulf %121, %124 : vector<32x32xf32>
      %cst_24 = arith.constant dense<0.000000e+00> : vector<32xf32>
      %126 = vector.multi_reduction <add>, %125, %cst_24 [1] : vector<32x32xf32> to vector<32xf32>
      %127 = vector.shape_cast %126 : vector<32xf32> to vector<32x1xf32>
      %128 = vector.broadcast %123 : vector<1x1xf32> to vector<32x1xf32>
      %129 = arith.mulf %128, %127 : vector<32x1xf32>
      %130 = vector.broadcast %129 : vector<32x1xf32> to vector<32x32xf32>
      %131 = vector.broadcast %122 : vector<1x32xf32> to vector<32x32xf32>
      %132 = arith.mulf %130, %131 : vector<32x32xf32>
      %133 = arith.subf %121, %132 : vector<32x32xf32>
      %134 = vector.extract_strided_slice %19 {offsets = [23, 0], sizes = [1, 32], strides = [1, 1]} : vector<32x32xf32> to vector<1x32xf32>
      %135 = vector.extract_strided_slice %32 {offsets = [23, 0], sizes = [1, 1], strides = [1, 1]} : vector<32x1xf32> to vector<1x1xf32>
      %136 = vector.broadcast %134 : vector<1x32xf32> to vector<32x32xf32>
      %137 = arith.mulf %133, %136 : vector<32x32xf32>
      %cst_25 = arith.constant dense<0.000000e+00> : vector<32xf32>
      %138 = vector.multi_reduction <add>, %137, %cst_25 [1] : vector<32x32xf32> to vector<32xf32>
      %139 = vector.shape_cast %138 : vector<32xf32> to vector<32x1xf32>
      %140 = vector.broadcast %135 : vector<1x1xf32> to vector<32x1xf32>
      %141 = arith.mulf %140, %139 : vector<32x1xf32>
      %142 = vector.broadcast %141 : vector<32x1xf32> to vector<32x32xf32>
      %143 = vector.broadcast %134 : vector<1x32xf32> to vector<32x32xf32>
      %144 = arith.mulf %142, %143 : vector<32x32xf32>
      %145 = arith.subf %133, %144 : vector<32x32xf32>
      %146 = vector.extract_strided_slice %19 {offsets = [22, 0], sizes = [1, 32], strides = [1, 1]} : vector<32x32xf32> to vector<1x32xf32>
      %147 = vector.extract_strided_slice %32 {offsets = [22, 0], sizes = [1, 1], strides = [1, 1]} : vector<32x1xf32> to vector<1x1xf32>
      %148 = vector.broadcast %146 : vector<1x32xf32> to vector<32x32xf32>
      %149 = arith.mulf %145, %148 : vector<32x32xf32>
      %cst_26 = arith.constant dense<0.000000e+00> : vector<32xf32>
      %150 = vector.multi_reduction <add>, %149, %cst_26 [1] : vector<32x32xf32> to vector<32xf32>
      %151 = vector.shape_cast %150 : vector<32xf32> to vector<32x1xf32>
      %152 = vector.broadcast %147 : vector<1x1xf32> to vector<32x1xf32>
      %153 = arith.mulf %152, %151 : vector<32x1xf32>
      %154 = vector.broadcast %153 : vector<32x1xf32> to vector<32x32xf32>
      %155 = vector.broadcast %146 : vector<1x32xf32> to vector<32x32xf32>
      %156 = arith.mulf %154, %155 : vector<32x32xf32>
      %157 = arith.subf %145, %156 : vector<32x32xf32>
      %158 = vector.extract_strided_slice %19 {offsets = [21, 0], sizes = [1, 32], strides = [1, 1]} : vector<32x32xf32> to vector<1x32xf32>
      %159 = vector.extract_strided_slice %32 {offsets = [21, 0], sizes = [1, 1], strides = [1, 1]} : vector<32x1xf32> to vector<1x1xf32>
      %160 = vector.broadcast %158 : vector<1x32xf32> to vector<32x32xf32>
      %161 = arith.mulf %157, %160 : vector<32x32xf32>
      %cst_27 = arith.constant dense<0.000000e+00> : vector<32xf32>
      %162 = vector.multi_reduction <add>, %161, %cst_27 [1] : vector<32x32xf32> to vector<32xf32>
      %163 = vector.shape_cast %162 : vector<32xf32> to vector<32x1xf32>
      %164 = vector.broadcast %159 : vector<1x1xf32> to vector<32x1xf32>
      %165 = arith.mulf %164, %163 : vector<32x1xf32>
      %166 = vector.broadcast %165 : vector<32x1xf32> to vector<32x32xf32>
      %167 = vector.broadcast %158 : vector<1x32xf32> to vector<32x32xf32>
      %168 = arith.mulf %166, %167 : vector<32x32xf32>
      %169 = arith.subf %157, %168 : vector<32x32xf32>
      %170 = vector.extract_strided_slice %19 {offsets = [20, 0], sizes = [1, 32], strides = [1, 1]} : vector<32x32xf32> to vector<1x32xf32>
      %171 = vector.extract_strided_slice %32 {offsets = [20, 0], sizes = [1, 1], strides = [1, 1]} : vector<32x1xf32> to vector<1x1xf32>
      %172 = vector.broadcast %170 : vector<1x32xf32> to vector<32x32xf32>
      %173 = arith.mulf %169, %172 : vector<32x32xf32>
      %cst_28 = arith.constant dense<0.000000e+00> : vector<32xf32>
      %174 = vector.multi_reduction <add>, %173, %cst_28 [1] : vector<32x32xf32> to vector<32xf32>
      %175 = vector.shape_cast %174 : vector<32xf32> to vector<32x1xf32>
      %176 = vector.broadcast %171 : vector<1x1xf32> to vector<32x1xf32>
      %177 = arith.mulf %176, %175 : vector<32x1xf32>
      %178 = vector.broadcast %177 : vector<32x1xf32> to vector<32x32xf32>
      %179 = vector.broadcast %170 : vector<1x32xf32> to vector<32x32xf32>
      %180 = arith.mulf %178, %179 : vector<32x32xf32>
      %181 = arith.subf %169, %180 : vector<32x32xf32>
      %182 = vector.extract_strided_slice %19 {offsets = [19, 0], sizes = [1, 32], strides = [1, 1]} : vector<32x32xf32> to vector<1x32xf32>
      %183 = vector.extract_strided_slice %32 {offsets = [19, 0], sizes = [1, 1], strides = [1, 1]} : vector<32x1xf32> to vector<1x1xf32>
      %184 = vector.broadcast %182 : vector<1x32xf32> to vector<32x32xf32>
      %185 = arith.mulf %181, %184 : vector<32x32xf32>
      %cst_29 = arith.constant dense<0.000000e+00> : vector<32xf32>
      %186 = vector.multi_reduction <add>, %185, %cst_29 [1] : vector<32x32xf32> to vector<32xf32>
      %187 = vector.shape_cast %186 : vector<32xf32> to vector<32x1xf32>
      %188 = vector.broadcast %183 : vector<1x1xf32> to vector<32x1xf32>
      %189 = arith.mulf %188, %187 : vector<32x1xf32>
      %190 = vector.broadcast %189 : vector<32x1xf32> to vector<32x32xf32>
      %191 = vector.broadcast %182 : vector<1x32xf32> to vector<32x32xf32>
      %192 = arith.mulf %190, %191 : vector<32x32xf32>
      %193 = arith.subf %181, %192 : vector<32x32xf32>
      %194 = vector.extract_strided_slice %19 {offsets = [18, 0], sizes = [1, 32], strides = [1, 1]} : vector<32x32xf32> to vector<1x32xf32>
      %195 = vector.extract_strided_slice %32 {offsets = [18, 0], sizes = [1, 1], strides = [1, 1]} : vector<32x1xf32> to vector<1x1xf32>
      %196 = vector.broadcast %194 : vector<1x32xf32> to vector<32x32xf32>
      %197 = arith.mulf %193, %196 : vector<32x32xf32>
      %cst_30 = arith.constant dense<0.000000e+00> : vector<32xf32>
      %198 = vector.multi_reduction <add>, %197, %cst_30 [1] : vector<32x32xf32> to vector<32xf32>
      %199 = vector.shape_cast %198 : vector<32xf32> to vector<32x1xf32>
      %200 = vector.broadcast %195 : vector<1x1xf32> to vector<32x1xf32>
      %201 = arith.mulf %200, %199 : vector<32x1xf32>
      %202 = vector.broadcast %201 : vector<32x1xf32> to vector<32x32xf32>
      %203 = vector.broadcast %194 : vector<1x32xf32> to vector<32x32xf32>
      %204 = arith.mulf %202, %203 : vector<32x32xf32>
      %205 = arith.subf %193, %204 : vector<32x32xf32>
      %206 = vector.extract_strided_slice %19 {offsets = [17, 0], sizes = [1, 32], strides = [1, 1]} : vector<32x32xf32> to vector<1x32xf32>
      %207 = vector.extract_strided_slice %32 {offsets = [17, 0], sizes = [1, 1], strides = [1, 1]} : vector<32x1xf32> to vector<1x1xf32>
      %208 = vector.broadcast %206 : vector<1x32xf32> to vector<32x32xf32>
      %209 = arith.mulf %205, %208 : vector<32x32xf32>
      %cst_31 = arith.constant dense<0.000000e+00> : vector<32xf32>
      %210 = vector.multi_reduction <add>, %209, %cst_31 [1] : vector<32x32xf32> to vector<32xf32>
      %211 = vector.shape_cast %210 : vector<32xf32> to vector<32x1xf32>
      %212 = vector.broadcast %207 : vector<1x1xf32> to vector<32x1xf32>
      %213 = arith.mulf %212, %211 : vector<32x1xf32>
      %214 = vector.broadcast %213 : vector<32x1xf32> to vector<32x32xf32>
      %215 = vector.broadcast %206 : vector<1x32xf32> to vector<32x32xf32>
      %216 = arith.mulf %214, %215 : vector<32x32xf32>
      %217 = arith.subf %205, %216 : vector<32x32xf32>
      %218 = vector.extract_strided_slice %19 {offsets = [16, 0], sizes = [1, 32], strides = [1, 1]} : vector<32x32xf32> to vector<1x32xf32>
      %219 = vector.extract_strided_slice %32 {offsets = [16, 0], sizes = [1, 1], strides = [1, 1]} : vector<32x1xf32> to vector<1x1xf32>
      %220 = vector.broadcast %218 : vector<1x32xf32> to vector<32x32xf32>
      %221 = arith.mulf %217, %220 : vector<32x32xf32>
      %cst_32 = arith.constant dense<0.000000e+00> : vector<32xf32>
      %222 = vector.multi_reduction <add>, %221, %cst_32 [1] : vector<32x32xf32> to vector<32xf32>
      %223 = vector.shape_cast %222 : vector<32xf32> to vector<32x1xf32>
      %224 = vector.broadcast %219 : vector<1x1xf32> to vector<32x1xf32>
      %225 = arith.mulf %224, %223 : vector<32x1xf32>
      %226 = vector.broadcast %225 : vector<32x1xf32> to vector<32x32xf32>
      %227 = vector.broadcast %218 : vector<1x32xf32> to vector<32x32xf32>
      %228 = arith.mulf %226, %227 : vector<32x32xf32>
      %229 = arith.subf %217, %228 : vector<32x32xf32>
      %230 = vector.extract_strided_slice %19 {offsets = [15, 0], sizes = [1, 32], strides = [1, 1]} : vector<32x32xf32> to vector<1x32xf32>
      %231 = vector.extract_strided_slice %32 {offsets = [15, 0], sizes = [1, 1], strides = [1, 1]} : vector<32x1xf32> to vector<1x1xf32>
      %232 = vector.broadcast %230 : vector<1x32xf32> to vector<32x32xf32>
      %233 = arith.mulf %229, %232 : vector<32x32xf32>
      %cst_33 = arith.constant dense<0.000000e+00> : vector<32xf32>
      %234 = vector.multi_reduction <add>, %233, %cst_33 [1] : vector<32x32xf32> to vector<32xf32>
      %235 = vector.shape_cast %234 : vector<32xf32> to vector<32x1xf32>
      %236 = vector.broadcast %231 : vector<1x1xf32> to vector<32x1xf32>
      %237 = arith.mulf %236, %235 : vector<32x1xf32>
      %238 = vector.broadcast %237 : vector<32x1xf32> to vector<32x32xf32>
      %239 = vector.broadcast %230 : vector<1x32xf32> to vector<32x32xf32>
      %240 = arith.mulf %238, %239 : vector<32x32xf32>
      %241 = arith.subf %229, %240 : vector<32x32xf32>
      %242 = vector.extract_strided_slice %19 {offsets = [14, 0], sizes = [1, 32], strides = [1, 1]} : vector<32x32xf32> to vector<1x32xf32>
      %243 = vector.extract_strided_slice %32 {offsets = [14, 0], sizes = [1, 1], strides = [1, 1]} : vector<32x1xf32> to vector<1x1xf32>
      %244 = vector.broadcast %242 : vector<1x32xf32> to vector<32x32xf32>
      %245 = arith.mulf %241, %244 : vector<32x32xf32>
      %cst_34 = arith.constant dense<0.000000e+00> : vector<32xf32>
      %246 = vector.multi_reduction <add>, %245, %cst_34 [1] : vector<32x32xf32> to vector<32xf32>
      %247 = vector.shape_cast %246 : vector<32xf32> to vector<32x1xf32>
      %248 = vector.broadcast %243 : vector<1x1xf32> to vector<32x1xf32>
      %249 = arith.mulf %248, %247 : vector<32x1xf32>
      %250 = vector.broadcast %249 : vector<32x1xf32> to vector<32x32xf32>
      %251 = vector.broadcast %242 : vector<1x32xf32> to vector<32x32xf32>
      %252 = arith.mulf %250, %251 : vector<32x32xf32>
      %253 = arith.subf %241, %252 : vector<32x32xf32>
      %254 = vector.extract_strided_slice %19 {offsets = [13, 0], sizes = [1, 32], strides = [1, 1]} : vector<32x32xf32> to vector<1x32xf32>
      %255 = vector.extract_strided_slice %32 {offsets = [13, 0], sizes = [1, 1], strides = [1, 1]} : vector<32x1xf32> to vector<1x1xf32>
      %256 = vector.broadcast %254 : vector<1x32xf32> to vector<32x32xf32>
      %257 = arith.mulf %253, %256 : vector<32x32xf32>
      %cst_35 = arith.constant dense<0.000000e+00> : vector<32xf32>
      %258 = vector.multi_reduction <add>, %257, %cst_35 [1] : vector<32x32xf32> to vector<32xf32>
      %259 = vector.shape_cast %258 : vector<32xf32> to vector<32x1xf32>
      %260 = vector.broadcast %255 : vector<1x1xf32> to vector<32x1xf32>
      %261 = arith.mulf %260, %259 : vector<32x1xf32>
      %262 = vector.broadcast %261 : vector<32x1xf32> to vector<32x32xf32>
      %263 = vector.broadcast %254 : vector<1x32xf32> to vector<32x32xf32>
      %264 = arith.mulf %262, %263 : vector<32x32xf32>
      %265 = arith.subf %253, %264 : vector<32x32xf32>
      %266 = vector.extract_strided_slice %19 {offsets = [12, 0], sizes = [1, 32], strides = [1, 1]} : vector<32x32xf32> to vector<1x32xf32>
      %267 = vector.extract_strided_slice %32 {offsets = [12, 0], sizes = [1, 1], strides = [1, 1]} : vector<32x1xf32> to vector<1x1xf32>
      %268 = vector.broadcast %266 : vector<1x32xf32> to vector<32x32xf32>
      %269 = arith.mulf %265, %268 : vector<32x32xf32>
      %cst_36 = arith.constant dense<0.000000e+00> : vector<32xf32>
      %270 = vector.multi_reduction <add>, %269, %cst_36 [1] : vector<32x32xf32> to vector<32xf32>
      %271 = vector.shape_cast %270 : vector<32xf32> to vector<32x1xf32>
      %272 = vector.broadcast %267 : vector<1x1xf32> to vector<32x1xf32>
      %273 = arith.mulf %272, %271 : vector<32x1xf32>
      %274 = vector.broadcast %273 : vector<32x1xf32> to vector<32x32xf32>
      %275 = vector.broadcast %266 : vector<1x32xf32> to vector<32x32xf32>
      %276 = arith.mulf %274, %275 : vector<32x32xf32>
      %277 = arith.subf %265, %276 : vector<32x32xf32>
      %278 = vector.extract_strided_slice %19 {offsets = [11, 0], sizes = [1, 32], strides = [1, 1]} : vector<32x32xf32> to vector<1x32xf32>
      %279 = vector.extract_strided_slice %32 {offsets = [11, 0], sizes = [1, 1], strides = [1, 1]} : vector<32x1xf32> to vector<1x1xf32>
      %280 = vector.broadcast %278 : vector<1x32xf32> to vector<32x32xf32>
      %281 = arith.mulf %277, %280 : vector<32x32xf32>
      %cst_37 = arith.constant dense<0.000000e+00> : vector<32xf32>
      %282 = vector.multi_reduction <add>, %281, %cst_37 [1] : vector<32x32xf32> to vector<32xf32>
      %283 = vector.shape_cast %282 : vector<32xf32> to vector<32x1xf32>
      %284 = vector.broadcast %279 : vector<1x1xf32> to vector<32x1xf32>
      %285 = arith.mulf %284, %283 : vector<32x1xf32>
      %286 = vector.broadcast %285 : vector<32x1xf32> to vector<32x32xf32>
      %287 = vector.broadcast %278 : vector<1x32xf32> to vector<32x32xf32>
      %288 = arith.mulf %286, %287 : vector<32x32xf32>
      %289 = arith.subf %277, %288 : vector<32x32xf32>
      %290 = vector.extract_strided_slice %19 {offsets = [10, 0], sizes = [1, 32], strides = [1, 1]} : vector<32x32xf32> to vector<1x32xf32>
      %291 = vector.extract_strided_slice %32 {offsets = [10, 0], sizes = [1, 1], strides = [1, 1]} : vector<32x1xf32> to vector<1x1xf32>
      %292 = vector.broadcast %290 : vector<1x32xf32> to vector<32x32xf32>
      %293 = arith.mulf %289, %292 : vector<32x32xf32>
      %cst_38 = arith.constant dense<0.000000e+00> : vector<32xf32>
      %294 = vector.multi_reduction <add>, %293, %cst_38 [1] : vector<32x32xf32> to vector<32xf32>
      %295 = vector.shape_cast %294 : vector<32xf32> to vector<32x1xf32>
      %296 = vector.broadcast %291 : vector<1x1xf32> to vector<32x1xf32>
      %297 = arith.mulf %296, %295 : vector<32x1xf32>
      %298 = vector.broadcast %297 : vector<32x1xf32> to vector<32x32xf32>
      %299 = vector.broadcast %290 : vector<1x32xf32> to vector<32x32xf32>
      %300 = arith.mulf %298, %299 : vector<32x32xf32>
      %301 = arith.subf %289, %300 : vector<32x32xf32>
      %302 = vector.extract_strided_slice %19 {offsets = [9, 0], sizes = [1, 32], strides = [1, 1]} : vector<32x32xf32> to vector<1x32xf32>
      %303 = vector.extract_strided_slice %32 {offsets = [9, 0], sizes = [1, 1], strides = [1, 1]} : vector<32x1xf32> to vector<1x1xf32>
      %304 = vector.broadcast %302 : vector<1x32xf32> to vector<32x32xf32>
      %305 = arith.mulf %301, %304 : vector<32x32xf32>
      %cst_39 = arith.constant dense<0.000000e+00> : vector<32xf32>
      %306 = vector.multi_reduction <add>, %305, %cst_39 [1] : vector<32x32xf32> to vector<32xf32>
      %307 = vector.shape_cast %306 : vector<32xf32> to vector<32x1xf32>
      %308 = vector.broadcast %303 : vector<1x1xf32> to vector<32x1xf32>
      %309 = arith.mulf %308, %307 : vector<32x1xf32>
      %310 = vector.broadcast %309 : vector<32x1xf32> to vector<32x32xf32>
      %311 = vector.broadcast %302 : vector<1x32xf32> to vector<32x32xf32>
      %312 = arith.mulf %310, %311 : vector<32x32xf32>
      %313 = arith.subf %301, %312 : vector<32x32xf32>
      %314 = vector.extract_strided_slice %19 {offsets = [8, 0], sizes = [1, 32], strides = [1, 1]} : vector<32x32xf32> to vector<1x32xf32>
      %315 = vector.extract_strided_slice %32 {offsets = [8, 0], sizes = [1, 1], strides = [1, 1]} : vector<32x1xf32> to vector<1x1xf32>
      %316 = vector.broadcast %314 : vector<1x32xf32> to vector<32x32xf32>
      %317 = arith.mulf %313, %316 : vector<32x32xf32>
      %cst_40 = arith.constant dense<0.000000e+00> : vector<32xf32>
      %318 = vector.multi_reduction <add>, %317, %cst_40 [1] : vector<32x32xf32> to vector<32xf32>
      %319 = vector.shape_cast %318 : vector<32xf32> to vector<32x1xf32>
      %320 = vector.broadcast %315 : vector<1x1xf32> to vector<32x1xf32>
      %321 = arith.mulf %320, %319 : vector<32x1xf32>
      %322 = vector.broadcast %321 : vector<32x1xf32> to vector<32x32xf32>
      %323 = vector.broadcast %314 : vector<1x32xf32> to vector<32x32xf32>
      %324 = arith.mulf %322, %323 : vector<32x32xf32>
      %325 = arith.subf %313, %324 : vector<32x32xf32>
      %326 = vector.extract_strided_slice %19 {offsets = [7, 0], sizes = [1, 32], strides = [1, 1]} : vector<32x32xf32> to vector<1x32xf32>
      %327 = vector.extract_strided_slice %32 {offsets = [7, 0], sizes = [1, 1], strides = [1, 1]} : vector<32x1xf32> to vector<1x1xf32>
      %328 = vector.broadcast %326 : vector<1x32xf32> to vector<32x32xf32>
      %329 = arith.mulf %325, %328 : vector<32x32xf32>
      %cst_41 = arith.constant dense<0.000000e+00> : vector<32xf32>
      %330 = vector.multi_reduction <add>, %329, %cst_41 [1] : vector<32x32xf32> to vector<32xf32>
      %331 = vector.shape_cast %330 : vector<32xf32> to vector<32x1xf32>
      %332 = vector.broadcast %327 : vector<1x1xf32> to vector<32x1xf32>
      %333 = arith.mulf %332, %331 : vector<32x1xf32>
      %334 = vector.broadcast %333 : vector<32x1xf32> to vector<32x32xf32>
      %335 = vector.broadcast %326 : vector<1x32xf32> to vector<32x32xf32>
      %336 = arith.mulf %334, %335 : vector<32x32xf32>
      %337 = arith.subf %325, %336 : vector<32x32xf32>
      %338 = vector.extract_strided_slice %19 {offsets = [6, 0], sizes = [1, 32], strides = [1, 1]} : vector<32x32xf32> to vector<1x32xf32>
      %339 = vector.extract_strided_slice %32 {offsets = [6, 0], sizes = [1, 1], strides = [1, 1]} : vector<32x1xf32> to vector<1x1xf32>
      %340 = vector.broadcast %338 : vector<1x32xf32> to vector<32x32xf32>
      %341 = arith.mulf %337, %340 : vector<32x32xf32>
      %cst_42 = arith.constant dense<0.000000e+00> : vector<32xf32>
      %342 = vector.multi_reduction <add>, %341, %cst_42 [1] : vector<32x32xf32> to vector<32xf32>
      %343 = vector.shape_cast %342 : vector<32xf32> to vector<32x1xf32>
      %344 = vector.broadcast %339 : vector<1x1xf32> to vector<32x1xf32>
      %345 = arith.mulf %344, %343 : vector<32x1xf32>
      %346 = vector.broadcast %345 : vector<32x1xf32> to vector<32x32xf32>
      %347 = vector.broadcast %338 : vector<1x32xf32> to vector<32x32xf32>
      %348 = arith.mulf %346, %347 : vector<32x32xf32>
      %349 = arith.subf %337, %348 : vector<32x32xf32>
      %350 = vector.extract_strided_slice %19 {offsets = [5, 0], sizes = [1, 32], strides = [1, 1]} : vector<32x32xf32> to vector<1x32xf32>
      %351 = vector.extract_strided_slice %32 {offsets = [5, 0], sizes = [1, 1], strides = [1, 1]} : vector<32x1xf32> to vector<1x1xf32>
      %352 = vector.broadcast %350 : vector<1x32xf32> to vector<32x32xf32>
      %353 = arith.mulf %349, %352 : vector<32x32xf32>
      %cst_43 = arith.constant dense<0.000000e+00> : vector<32xf32>
      %354 = vector.multi_reduction <add>, %353, %cst_43 [1] : vector<32x32xf32> to vector<32xf32>
      %355 = vector.shape_cast %354 : vector<32xf32> to vector<32x1xf32>
      %356 = vector.broadcast %351 : vector<1x1xf32> to vector<32x1xf32>
      %357 = arith.mulf %356, %355 : vector<32x1xf32>
      %358 = vector.broadcast %357 : vector<32x1xf32> to vector<32x32xf32>
      %359 = vector.broadcast %350 : vector<1x32xf32> to vector<32x32xf32>
      %360 = arith.mulf %358, %359 : vector<32x32xf32>
      %361 = arith.subf %349, %360 : vector<32x32xf32>
      %362 = vector.extract_strided_slice %19 {offsets = [4, 0], sizes = [1, 32], strides = [1, 1]} : vector<32x32xf32> to vector<1x32xf32>
      %363 = vector.extract_strided_slice %32 {offsets = [4, 0], sizes = [1, 1], strides = [1, 1]} : vector<32x1xf32> to vector<1x1xf32>
      %364 = vector.broadcast %362 : vector<1x32xf32> to vector<32x32xf32>
      %365 = arith.mulf %361, %364 : vector<32x32xf32>
      %cst_44 = arith.constant dense<0.000000e+00> : vector<32xf32>
      %366 = vector.multi_reduction <add>, %365, %cst_44 [1] : vector<32x32xf32> to vector<32xf32>
      %367 = vector.shape_cast %366 : vector<32xf32> to vector<32x1xf32>
      %368 = vector.broadcast %363 : vector<1x1xf32> to vector<32x1xf32>
      %369 = arith.mulf %368, %367 : vector<32x1xf32>
      %370 = vector.broadcast %369 : vector<32x1xf32> to vector<32x32xf32>
      %371 = vector.broadcast %362 : vector<1x32xf32> to vector<32x32xf32>
      %372 = arith.mulf %370, %371 : vector<32x32xf32>
      %373 = arith.subf %361, %372 : vector<32x32xf32>
      %374 = vector.extract_strided_slice %19 {offsets = [3, 0], sizes = [1, 32], strides = [1, 1]} : vector<32x32xf32> to vector<1x32xf32>
      %375 = vector.extract_strided_slice %32 {offsets = [3, 0], sizes = [1, 1], strides = [1, 1]} : vector<32x1xf32> to vector<1x1xf32>
      %376 = vector.broadcast %374 : vector<1x32xf32> to vector<32x32xf32>
      %377 = arith.mulf %373, %376 : vector<32x32xf32>
      %cst_45 = arith.constant dense<0.000000e+00> : vector<32xf32>
      %378 = vector.multi_reduction <add>, %377, %cst_45 [1] : vector<32x32xf32> to vector<32xf32>
      %379 = vector.shape_cast %378 : vector<32xf32> to vector<32x1xf32>
      %380 = vector.broadcast %375 : vector<1x1xf32> to vector<32x1xf32>
      %381 = arith.mulf %380, %379 : vector<32x1xf32>
      %382 = vector.broadcast %381 : vector<32x1xf32> to vector<32x32xf32>
      %383 = vector.broadcast %374 : vector<1x32xf32> to vector<32x32xf32>
      %384 = arith.mulf %382, %383 : vector<32x32xf32>
      %385 = arith.subf %373, %384 : vector<32x32xf32>
      %386 = vector.extract_strided_slice %19 {offsets = [2, 0], sizes = [1, 32], strides = [1, 1]} : vector<32x32xf32> to vector<1x32xf32>
      %387 = vector.extract_strided_slice %32 {offsets = [2, 0], sizes = [1, 1], strides = [1, 1]} : vector<32x1xf32> to vector<1x1xf32>
      %388 = vector.broadcast %386 : vector<1x32xf32> to vector<32x32xf32>
      %389 = arith.mulf %385, %388 : vector<32x32xf32>
      %cst_46 = arith.constant dense<0.000000e+00> : vector<32xf32>
      %390 = vector.multi_reduction <add>, %389, %cst_46 [1] : vector<32x32xf32> to vector<32xf32>
      %391 = vector.shape_cast %390 : vector<32xf32> to vector<32x1xf32>
      %392 = vector.broadcast %387 : vector<1x1xf32> to vector<32x1xf32>
      %393 = arith.mulf %392, %391 : vector<32x1xf32>
      %394 = vector.broadcast %393 : vector<32x1xf32> to vector<32x32xf32>
      %395 = vector.broadcast %386 : vector<1x32xf32> to vector<32x32xf32>
      %396 = arith.mulf %394, %395 : vector<32x32xf32>
      %397 = arith.subf %385, %396 : vector<32x32xf32>
      %398 = vector.extract_strided_slice %19 {offsets = [1, 0], sizes = [1, 32], strides = [1, 1]} : vector<32x32xf32> to vector<1x32xf32>
      %399 = vector.extract_strided_slice %32 {offsets = [1, 0], sizes = [1, 1], strides = [1, 1]} : vector<32x1xf32> to vector<1x1xf32>
      %400 = vector.broadcast %398 : vector<1x32xf32> to vector<32x32xf32>
      %401 = arith.mulf %397, %400 : vector<32x32xf32>
      %cst_47 = arith.constant dense<0.000000e+00> : vector<32xf32>
      %402 = vector.multi_reduction <add>, %401, %cst_47 [1] : vector<32x32xf32> to vector<32xf32>
      %403 = vector.shape_cast %402 : vector<32xf32> to vector<32x1xf32>
      %404 = vector.broadcast %399 : vector<1x1xf32> to vector<32x1xf32>
      %405 = arith.mulf %404, %403 : vector<32x1xf32>
      %406 = vector.broadcast %405 : vector<32x1xf32> to vector<32x32xf32>
      %407 = vector.broadcast %398 : vector<1x32xf32> to vector<32x32xf32>
      %408 = arith.mulf %406, %407 : vector<32x32xf32>
      %409 = arith.subf %397, %408 : vector<32x32xf32>
      %410 = vector.extract_strided_slice %19 {offsets = [0, 0], sizes = [1, 32], strides = [1, 1]} : vector<32x32xf32> to vector<1x32xf32>
      %411 = vector.extract_strided_slice %32 {offsets = [0, 0], sizes = [1, 1], strides = [1, 1]} : vector<32x1xf32> to vector<1x1xf32>
      %412 = vector.broadcast %410 : vector<1x32xf32> to vector<32x32xf32>
      %413 = arith.mulf %409, %412 : vector<32x32xf32>
      %cst_48 = arith.constant dense<0.000000e+00> : vector<32xf32>
      %414 = vector.multi_reduction <add>, %413, %cst_48 [1] : vector<32x32xf32> to vector<32xf32>
      %415 = vector.shape_cast %414 : vector<32xf32> to vector<32x1xf32>
      %416 = vector.broadcast %411 : vector<1x1xf32> to vector<32x1xf32>
      %417 = arith.mulf %416, %415 : vector<32x1xf32>
      %418 = vector.broadcast %417 : vector<32x1xf32> to vector<32x32xf32>
      %419 = vector.broadcast %410 : vector<1x32xf32> to vector<32x32xf32>
      %420 = arith.mulf %418, %419 : vector<32x32xf32>
      %421 = arith.subf %409, %420 : vector<32x32xf32>
      %c0_49 = arith.constant 0 : index
      %c0_50 = arith.constant 0 : index
      %422 = vector.load %arg4[%c0_49, %c0_50] : memref<32x32xf32, #tpu.memory_space<vmem>>, vector<32x32xf32>
      tpu.vector_store %arg4[%c0_49, %c0_50], %421 {strides = array<i32>} : memref<32x32xf32, #tpu.memory_space<vmem>>, vector<32x32xf32>,
    } else {
    }
    %c0 = arith.constant 0 : index
    %c0_1 = arith.constant 0 : index
    %3 = vector.load %arg2[%c0, %c0_1] : memref<8x32xf32, #tpu.memory_space<vmem>>, vector<8x32xf32>
    %c0_2 = arith.constant 0 : index
    %c0_3 = arith.constant 0 : index
    %4 = vector.load %arg4[%c0_2, %c0_3] : memref<32x32xf32, #tpu.memory_space<vmem>>, vector<32x32xf32>
    %cst = arith.constant dense<0.000000e+00> : vector<8x32xf32>
    %5 = tpu.matmul %3, %4, %cst {dimension_numbers = #tpu.dot_dimension_numbers<[1], [0], [0], [1], [0, 0, 1, 1], [], []>} : vector<8x32xf32>, vector<32x32xf32>, vector<8x32xf32> -> vector<8x32xf32>
    %c0_4 = arith.constant 0 : index
    %c0_5 = arith.constant 0 : index
    %6 = vector.load %arg3[%c0_4, %c0_5] : memref<8x32xf32, #tpu.memory_space<vmem>>, vector<8x32xf32>
    tpu.vector_store %arg3[%c0_4, %c0_5], %5 {strides = array<i32>} : memref<8x32xf32, #tpu.memory_space<vmem>>, vector<8x32xf32>,
    return
  }
  func.func @transform_0(%arg0: i32) -> (i32, i32) {
    %c0_i32 = arith.constant 0 : i32
    %c0_i32_0 = arith.constant 0 : i32
    %c0_i32_1 = arith.constant 0 : i32
    return %c0_i32, %c0_i32_0 : i32, i32
  }
  func.func @transform_1(%arg0: i32) -> (i32, i32) {
    %c0_i32 = arith.constant 0 : i32
    %c0_i32_0 = arith.constant 0 : i32
    %c0_i32_1 = arith.constant 0 : i32
    return %c0_i32, %c0_i32_0 : i32, i32
  }
  func.func @transform_2(%arg0: i32) -> (i32, i32) {
    %c0_i32 = arith.constant 0 : i32
    %c0_i32_0 = arith.constant 0 : i32
    %c0_i32_1 = arith.constant 0 : i32
    return %c0_i32, %c0_i32_0 : i32, i32
  }
}

</mosaic_0001>

<llo_original>
// kernel: tpu_custom_call.1
$region0: #{tpu_custom_call.1}
  #allocation0 [shape = 'u32[]', space=smem, size = 0x4, offset = 0x4, fixed_abs, tag = 'smem constant byte address 0x4 - core index']
  #allocation1 [shape = 'u32[144,128]{1,0:T(1,128)}', space=vmem, size = 0x12000, scoped, tag = 'internal scratch']
  #allocation2 [shape = 'f32[32,32]{1,0:T(8,128)}', space=vmem, size = 0x4000, scoped, tag = 'scratch operand']
  %s0 = inlined_call_operand.hbm [shape: f32[32,32], index: 0, kind: input, shape index: {}]
  %s1 = inlined_call_operand.hbm [shape: f32[8,32], index: 1, kind: input, shape index: {}]
  %s2 = inlined_call_operand.hbm [shape: f32[8,32], index: 2, kind: output, shape index: {}]
  %s3 = sld [smem:[#allocation0]]
  $region30: #{tpu_custom_call.1} parent=0
    _
  %s5 = ssub.s32 1, %s3
  %s6 = scalar_select 0, %s5, %s3
  $region1: #{tpu_custom_call.1} parent=0
    #allocation3 [shape = 'u8[16384]{0}', space=vmem, size = 0x4000, scoped, tag = 'input window, operand 0, single buffered']
    #allocation4 [shape = 's32[1]{0}', space=sflag, size = 0x4, scoped, tag = 'scoped memory for tpu_custom_call.1']
    #allocation5 [shape = 's32[1]{0}', space=sflag, size = 0x4, scoped, tag = 'scoped memory for tpu_custom_call.1']
    #allocation6 [shape = 'u8[4096]{0}', space=vmem, size = 0x1000, scoped, tag = 'input window, operand 1, single buffered']
    #allocation7 [shape = 's32[1]{0}', space=sflag, size = 0x4, scoped, tag = 'scoped memory for tpu_custom_call.1']
    #allocation8 [shape = 'u8[4096]{0}', space=vmem, size = 0x1000, scoped, tag = 'output window, operand 0, single buffered']
    %7 = vsyncpa [#allocation4], 0
    %8 = vsyncpa [#allocation7], 0
    %9 = vsyncpa [#allocation5], 0
    // Predicated region
    $region2: #{tpu_custom_call.1} parent=1 // pred_check
      _
    $region3: #{tpu_custom_call.1} parent=1 // pred_check_branch
      %11 = sbr.rel (0) target = $region5
    $region4: #{tpu_custom_call.1} parent=1 // pred_region
      %s13 = ssub.s32 512, 512
      %14 = vsyncadd [#allocation4], %s13
      %s15 = sshll.u32 [#allocation3], 4
      %s16 = int_to_ptr.vmem [resolvable:$true] %s15
      %21 = dma.hbm_to_vmem [thread:$0]  %s0, 512, %s16, [#allocation4], 128, 128, 8
    $region5: #{tpu_custom_call.1} parent=1 // pred_fallthru
      _
    // Predicated region
    $region6: #{tpu_custom_call.1} parent=1 // pred_check
      _
    $region7: #{tpu_custom_call.1} parent=1 // pred_check_branch
      %23 = sbr.rel (0) target = $region9
    $region8: #{tpu_custom_call.1} parent=1 // pred_region
      %s25 = ssub.s32 128, 128
      %26 = vsyncadd [#allocation7], %s25
      %s28 = sshll.u32 [#allocation6], 4
      %s29 = int_to_ptr.vmem [resolvable:$true] %s28
      %31 = dma.hbm_to_vmem [thread:$0]  %s1, 128, %s29, [#allocation7]
    $region9: #{tpu_custom_call.1} parent=1 // pred_fallthru
      _
    // Predicated region
    $region10: #{tpu_custom_call.1} parent=1 // pred_check
      _
    $region11: #{tpu_custom_call.1} parent=1 // pred_check_branch
      %33 = sbr.rel (0) target = $region13
    $region12: #{tpu_custom_call.1} parent=1 // pred_region
      %34 = dma.done [#allocation4], 512
    $region13: #{tpu_custom_call.1} parent=1 // pred_fallthru
      _
    // Predicated region
    $region14: #{tpu_custom_call.1} parent=1 // pred_check
      _
    $region15: #{tpu_custom_call.1} parent=1 // pred_check_branch
      %36 = sbr.rel (0) target = $region17
    $region16: #{tpu_custom_call.1} parent=1 // pred_region
      %37 = dma.done [#allocation7], 128
    $region17: #{tpu_custom_call.1} parent=1 // pred_fallthru
      _
    %p38 = scmp.eq.s32.totalorder 0, 0
    // Predicated region
    $region18: #{tpu_custom_call.1} parent=1 // pred_check
      %p39 = pneg %p38
    $region19: #{tpu_custom_call.1} parent=1 // pred_check_branch
      %41 = sbr.rel (%p39) target = $region21
    $region20: #{tpu_custom_call.1} parent=1 // pred_region
      %v42 = vld [vmem:[#allocation3] sm:$0xff]
      %v43 = vld [vmem:[#allocation3 + $0x8] sm:$0xff]
      %v44 = vld [vmem:[#allocation3 + $0x10] sm:$0xff]
      %v45 = vld [vmem:[#allocation3 + $0x18] sm:$0xff]
      %v46 = vlaneseq
      %v47 = vshrl.u32 %v46, 7
      %v48 = vadd.s32 %v47, 8
      %v49 = vadd.s32 %v47, 16
      %v50 = vadd.s32 %v47, 24
      %v51 = vlaneseq
      %v52 = vand.u32 %v51, 127
      %vm53 = vcmp.le.s32.totalorder %v47, %v52
      %vm54 = vcmp.le.s32.totalorder %v48, %v52
      %vm55 = vcmp.le.s32.totalorder %v49, %v52
      %vm56 = vcmp.le.s32.totalorder %v50, %v52
      %v57 = vsel %vm53, %v42, 0.0
      %v58 = vsel %vm54, %v43, 0.0
      %v59 = vsel %vm55, %v44, 0.0
      %v60 = vsel %vm56, %v45, 0.0
      %vm61 = vcmp.eq.s32.totalorder %v47, 31
      %vm62 = vcmp.eq.s32.totalorder %v48, 31
      %vm63 = vcmp.eq.s32.totalorder %v49, 31
      %vm64 = vcmp.eq.s32.totalorder %v50, 31
      %vm65 = vcmp.eq.s32.totalorder %v52, 31
      %vm66 = vmand %vm61, %vm65
      %vm67 = vmand %vm62, %vm65
      %vm68 = vmand %vm63, %vm65
      %vm69 = vmand %vm64, %vm65
      %v70 = vsel %vm66, 1.0, %v57
      %v71 = vsel %vm67, 1.0, %v58
      %v72 = vsel %vm68, 1.0, %v59
      %v73 = vsel %vm69, 1.0, %v60
      %v74 = vmul.f32 %v70, %v70
      %v75 = vmul.f32 %v71, %v71
      %v76 = vmul.f32 %v72, %v72
      %v77 = vmul.f32 %v73, %v73
      %vm78 = vcmask 261120
      %v79 = vsel %vm78, %v74, 0.0
      %80 = vadd.xlane.f32.xlu0 %v79
      %v81 = vpop.xlane.xlu0 %80
      %v82 = vsel %vm78, %v75, 0.0
      %83 = vadd.xlane.f32.xlu0 %v82
      %v84 = vpop.xlane.xlu0 %83
      %v85 = vsel %vm78, %v76, 0.0
      %86 = vadd.xlane.f32.xlu0 %v85
      %v87 = vpop.xlane.xlu0 %86
      %v88 = vsel %vm78, %v77, 0.0
      %89 = vadd.xlane.f32.xlu0 %v88
      %v90 = vpop.xlane.xlu0 %89
      %vm91 = vcmp.gt.f32.partialorder %v81, 0.0
      %vm92 = vcmp.gt.f32.partialorder %v84, 0.0
      %vm93 = vcmp.gt.f32.partialorder %v87, 0.0
      %vm94 = vcmp.gt.f32.partialorder %v90, 0.0
      %v95 = vsel %vm91, %v81, 1.0
      %v96 = vsel %vm92, %v84, 1.0
      %v97 = vsel %vm93, %v87, 1.0
      %v98 = vsel %vm94, %v90, 1.0
      %v99 = vrcp.pop %v95
      %v100 = vmul.f32 2.0, %v99
      %v101 = vrcp.pop %v96
      %v102 = vmul.f32 2.0, %v101
      %v103 = vrcp.pop %v97
      %v104 = vmul.f32 2.0, %v103
      %v105 = vrcp.pop %v98
      %v106 = vmul.f32 2.0, %v105
      %v107 = vsel %vm91, %v100, 0.0
      %v108 = vsel %vm92, %v102, 0.0
      %v109 = vsel %vm93, %v104, 0.0
      %v110 = vsel %vm94, %v106, 0.0
      %vm111 = vcmp.eq.s32.totalorder %v47, %v52
      %vm112 = vcmp.eq.s32.totalorder %v48, %v52
      %vm113 = vcmp.eq.s32.totalorder %v49, %v52
      %vm114 = vcmp.eq.s32.totalorder %v50, %v52
      %v115 = vsel %vm111, 1, 0
      %v116 = vsel %vm112, 1, 0
      %v117 = vsel %vm113, 1, 0
      %v118 = vsel %vm114, 1, 0
      %v119 = vcvt.s32.f32 %v115
      %v120 = vcvt.s32.f32 %v116
      %v121 = vcvt.s32.f32 %v117
      %v122 = vcvt.s32.f32 %v118
      %v123 = vlaneseq
      %v124 = vshrl.u32 %v123, 7
      %v125 = vsub.s32 7, %v124
      %v126 = vrot.slane %v73, %v125
      %v127 = vmul.f32 %v119, %v126
      %v128 = vmul.f32 %v120, %v126
      %v129 = vmul.f32 %v121, %v126
      %v130 = vmul.f32 %v122, %v126
      %v131 = vsel %vm78, %v127, 0.0
      %132 = vadd.xlane.f32.xlu0 %v131
      %v133 = vpop.xlane.xlu0 %132
      %v134 = vsel %vm78, %v128, 0.0
      %135 = vadd.xlane.f32.xlu0 %v134
      %v136 = vpop.xlane.xlu0 %135
      %v137 = vsel %vm78, %v129, 0.0
      %138 = vadd.xlane.f32.xlu0 %v137
      %v139 = vpop.xlane.xlu0 %138
      %v140 = vsel %vm78, %v130, 0.0
      %141 = vadd.xlane.f32.xlu0 %v140
      %v142 = vpop.xlane.xlu0 %141
      %v143 = vlaneseq
      %v144 = vshrl.u32 %v143, 7
      %v145 = vsub.s32 7, %v144
      %v146 = vrot.slane %v110, %v145
      %v147 = vmul.f32 %v146, %v133
      %v148 = vmul.f32 %v146, %v136
      %v149 = vmul.f32 %v146, %v139
      %v150 = vmul.f32 %v146, %v142
      %v151 = vmul.f32 %v147, %v126
      %v152 = vmul.f32 %v148, %v126
      %v153 = vmul.f32 %v149, %v126
      %v154 = vmul.f32 %v150, %v126
      %v155 = vsub.f32 %v119, %v151
      %v156 = vsub.f32 %v120, %v152
      %v157 = vsub.f32 %v121, %v153
      %v158 = vsub.f32 %v122, %v154
      %v159 = vlaneseq
      %v160 = vshrl.u32 %v159, 7
      %v161 = vsub.s32 6, %v160
      %v162 = vrot.slane %v73, %v161
      %v163 = vmul.f32 %v155, %v162
      %v164 = vmul.f32 %v156, %v162
      %v165 = vmul.f32 %v157, %v162
      %v166 = vmul.f32 %v158, %v162
      %v167 = vsel %vm78, %v163, 0.0
      %168 = vadd.xlane.f32.xlu0 %v167
      %v169 = vpop.xlane.xlu0 %168
      %v170 = vsel %vm78, %v164, 0.0
      %171 = vadd.xlane.f32.xlu0 %v170
      %v172 = vpop.xlane.xlu0 %171
      %v173 = vsel %vm78, %v165, 0.0
      %174 = vadd.xlane.f32.xlu0 %v173
      %v175 = vpop.xlane.xlu0 %174
      %v176 = vsel %vm78, %v166, 0.0
      %177 = vadd.xlane.f32.xlu0 %v176
      %v178 = vpop.xlane.xlu0 %177
      %v179 = vlaneseq
      %v180 = vshrl.u32 %v179, 7
      %v181 = vsub.s32 6, %v180
      %v182 = vrot.slane %v110, %v181
      %v183 = vmul.f32 %v182, %v169
      %v184 = vmul.f32 %v182, %v172
      %v185 = vmul.f32 %v182, %v175
      %v186 = vmul.f32 %v182, %v178
      %v187 = vmul.f32 %v183, %v162
      %v188 = vmul.f32 %v184, %v162
      %v189 = vmul.f32 %v185, %v162
      %v190 = vmul.f32 %v186, %v162
      %v191 = vsub.f32 %v155, %v187
      %v192 = vsub.f32 %v156, %v188
      %v193 = vsub.f32 %v157, %v189
      %v194 = vsub.f32 %v158, %v190
      %v195 = vlaneseq
      %v196 = vshrl.u32 %v195, 7
      %v197 = vsub.s32 5, %v196
      %v198 = vrot.slane %v73, %v197
      %v199 = vmul.f32 %v191, %v198
      %v200 = vmul.f32 %v192, %v198
      %v201 = vmul.f32 %v193, %v198
      %v202 = vmul.f32 %v194, %v198
      %v203 = vsel %vm78, %v199, 0.0
      %204 = vadd.xlane.f32.xlu0 %v203
      %v205 = vpop.xlane.xlu0 %204
      %v206 = vsel %vm78, %v200, 0.0
      %207 = vadd.xlane.f32.xlu0 %v206
      %v208 = vpop.xlane.xlu0 %207
      %v209 = vsel %vm78, %v201, 0.0
      %210 = vadd.xlane.f32.xlu0 %v209
      %v211 = vpop.xlane.xlu0 %210
      %v212 = vsel %vm78, %v202, 0.0
      %213 = vadd.xlane.f32.xlu0 %v212
      %v214 = vpop.xlane.xlu0 %213
      %v215 = vlaneseq
      %v216 = vshrl.u32 %v215, 7
      %v217 = vsub.s32 5, %v216
      %v218 = vrot.slane %v110, %v217
      %v219 = vmul.f32 %v218, %v205
      %v220 = vmul.f32 %v218, %v208
      %v221 = vmul.f32 %v218, %v211
      %v222 = vmul.f32 %v218, %v214
      %v223 = vmul.f32 %v219, %v198
      %v224 = vmul.f32 %v220, %v198
      %v225 = vmul.f32 %v221, %v198
      %v226 = vmul.f32 %v222, %v198
      %v227 = vsub.f32 %v191, %v223
      %v228 = vsub.f32 %v192, %v224
      %v229 = vsub.f32 %v193, %v225
      %v230 = vsub.f32 %v194, %v226
      %v231 = vlaneseq
      %v232 = vshrl.u32 %v231, 7
      %v233 = vsub.s32 4, %v232
      %v234 = vrot.slane %v73, %v233
      %v235 = vmul.f32 %v227, %v234
      %v236 = vmul.f32 %v228, %v234
      %v237 = vmul.f32 %v229, %v234
      %v238 = vmul.f32 %v230, %v234
      %v239 = vsel %vm78, %v235, 0.0
      %240 = vadd.xlane.f32.xlu0 %v239
      %v241 = vpop.xlane.xlu0 %240
      %v242 = vsel %vm78, %v236, 0.0
      %243 = vadd.xlane.f32.xlu0 %v242
      %v244 = vpop.xlane.xlu0 %243
      %v245 = vsel %vm78, %v237, 0.0
      %246 = vadd.xlane.f32.xlu0 %v245
      %v247 = vpop.xlane.xlu0 %246
      %v248 = vsel %vm78, %v238, 0.0
      %249 = vadd.xlane.f32.xlu0 %v248
      %v250 = vpop.xlane.xlu0 %249
      %v251 = vlaneseq
      %v252 = vshrl.u32 %v251, 7
      %v253 = vsub.s32 4, %v252
      %v254 = vrot.slane %v110, %v253
      %v255 = vmul.f32 %v254, %v241
      %v256 = vmul.f32 %v254, %v244
      %v257 = vmul.f32 %v254, %v247
      %v258 = vmul.f32 %v254, %v250
      %v259 = vmul.f32 %v255, %v234
      %v260 = vmul.f32 %v256, %v234
      %v261 = vmul.f32 %v257, %v234
      %v262 = vmul.f32 %v258, %v234
      %v263 = vsub.f32 %v227, %v259
      %v264 = vsub.f32 %v228, %v260
      %v265 = vsub.f32 %v229, %v261
      %v266 = vsub.f32 %v230, %v262
      %v267 = vlaneseq
      %v268 = vshrl.u32 %v267, 7
      %v269 = vsub.s32 3, %v268
      %v270 = vrot.slane %v73, %v269
      %v271 = vmul.f32 %v263, %v270
      %v272 = vmul.f32 %v264, %v270
      %v273 = vmul.f32 %v265, %v270
      %v274 = vmul.f32 %v266, %v270
      %v275 = vsel %vm78, %v271, 0.0
      %276 = vadd.xlane.f32.xlu0 %v275
      %v277 = vpop.xlane.xlu0 %276
      %v278 = vsel %vm78, %v272, 0.0
      %279 = vadd.xlane.f32.xlu0 %v278
      %v280 = vpop.xlane.xlu0 %279
      %v281 = vsel %vm78, %v273, 0.0
      %282 = vadd.xlane.f32.xlu0 %v281
      %v283 = vpop.xlane.xlu0 %282
      %v284 = vsel %vm78, %v274, 0.0
      %285 = vadd.xlane.f32.xlu0 %v284
      %v286 = vpop.xlane.xlu0 %285
      %v287 = vlaneseq
      %v288 = vshrl.u32 %v287, 7
      %v289 = vsub.s32 3, %v288
      %v290 = vrot.slane %v110, %v289
      %v291 = vmul.f32 %v290, %v277
      %v292 = vmul.f32 %v290, %v280
      %v293 = vmul.f32 %v290, %v283
      %v294 = vmul.f32 %v290, %v286
      %v295 = vmul.f32 %v291, %v270
      %v296 = vmul.f32 %v292, %v270
      %v297 = vmul.f32 %v293, %v270
      %v298 = vmul.f32 %v294, %v270
      %v299 = vsub.f32 %v263, %v295
      %v300 = vsub.f32 %v264, %v296
      %v301 = vsub.f32 %v265, %v297
      %v302 = vsub.f32 %v266, %v298
      %v303 = vlaneseq
      %v304 = vshrl.u32 %v303, 7
      %v305 = vsub.s32 2, %v304
      %v306 = vrot.slane %v73, %v305
      %v307 = vmul.f32 %v299, %v306
      %v308 = vmul.f32 %v300, %v306
      %v309 = vmul.f32 %v301, %v306
      %v310 = vmul.f32 %v302, %v306
      %v311 = vsel %vm78, %v307, 0.0
      %312 = vadd.xlane.f32.xlu0 %v311
      %v313 = vpop.xlane.xlu0 %312
      %v314 = vsel %vm78, %v308, 0.0
      %315 = vadd.xlane.f32.xlu0 %v314
      %v316 = vpop.xlane.xlu0 %315
      %v317 = vsel %vm78, %v309, 0.0
      %318 = vadd.xlane.f32.xlu0 %v317
      %v319 = vpop.xlane.xlu0 %318
      %v320 = vsel %vm78, %v310, 0.0
      %321 = vadd.xlane.f32.xlu0 %v320
      %v322 = vpop.xlane.xlu0 %321
      %v323 = vlaneseq
      %v324 = vshrl.u32 %v323, 7
      %v325 = vsub.s32 2, %v324
      %v326 = vrot.slane %v110, %v325
      %v327 = vmul.f32 %v326, %v313
      %v328 = vmul.f32 %v326, %v316
      %v329 = vmul.f32 %v326, %v319
      %v330 = vmul.f32 %v326, %v322
      %v331 = vmul.f32 %v327, %v306
      %v332 = vmul.f32 %v328, %v306
      %v333 = vmul.f32 %v329, %v306
      %v334 = vmul.f32 %v330, %v306
      %v335 = vsub.f32 %v299, %v331
      %v336 = vsub.f32 %v300, %v332
      %v337 = vsub.f32 %v301, %v333
      %v338 = vsub.f32 %v302, %v334
      %v339 = vlaneseq
      %v340 = vshrl.u32 %v339, 7
      %v341 = vsub.s32 1, %v340
      %v342 = vrot.slane %v73, %v341
      %v343 = vmul.f32 %v335, %v342
      %v344 = vmul.f32 %v336, %v342
      %v345 = vmul.f32 %v337, %v342
      %v346 = vmul.f32 %v338, %v342
      %v347 = vsel %vm78, %v343, 0.0
      %348 = vadd.xlane.f32.xlu0 %v347
      %v349 = vpop.xlane.xlu0 %348
      %v350 = vsel %vm78, %v344, 0.0
      %351 = vadd.xlane.f32.xlu0 %v350
      %v352 = vpop.xlane.xlu0 %351
      %v353 = vsel %vm78, %v345, 0.0
      %354 = vadd.xlane.f32.xlu0 %v353
      %v355 = vpop.xlane.xlu0 %354
      %v356 = vsel %vm78, %v346, 0.0
      %357 = vadd.xlane.f32.xlu0 %v356
      %v358 = vpop.xlane.xlu0 %357
      %v359 = vlaneseq
      %v360 = vshrl.u32 %v359, 7
      %v361 = vsub.s32 1, %v360
      %v362 = vrot.slane %v110, %v361
      %v363 = vmul.f32 %v362, %v349
      %v364 = vmul.f32 %v362, %v352
      %v365 = vmul.f32 %v362, %v355
      %v366 = vmul.f32 %v362, %v358
      %v367 = vmul.f32 %v363, %v342
      %v368 = vmul.f32 %v364, %v342
      %v369 = vmul.f32 %v365, %v342
      %v370 = vmul.f32 %v366, %v342
      %v371 = vsub.f32 %v335, %v367
      %v372 = vsub.f32 %v336, %v368
      %v373 = vsub.f32 %v337, %v369
      %v374 = vsub.f32 %v338, %v370
      %v375 = vlaneseq
      %v376 = vshrl.u32 %v375, 7
      %v377 = vsub.s32 0, %v376
      %v378 = vrot.slane %v73, %v377
      %v379 = vmul.f32 %v371, %v378
      %v380 = vmul.f32 %v372, %v378
      %v381 = vmul.f32 %v373, %v378
      %v382 = vmul.f32 %v374, %v378
      %v383 = vsel %vm78, %v379, 0.0
      %384 = vadd.xlane.f32.xlu0 %v383
      %v385 = vpop.xlane.xlu0 %384
      %v386 = vsel %vm78, %v380, 0.0
      %387 = vadd.xlane.f32.xlu0 %v386
      %v388 = vpop.xlane.xlu0 %387
      %v389 = vsel %vm78, %v381, 0.0
      %390 = vadd.xlane.f32.xlu0 %v389
      %v391 = vpop.xlane.xlu0 %390
      %v392 = vsel %vm78, %v382, 0.0
      %393 = vadd.xlane.f32.xlu0 %v392
      %v394 = vpop.xlane.xlu0 %393
      %v395 = vlaneseq
      %v396 = vshrl.u32 %v395, 7
      %v397 = vsub.s32 0, %v396
      %v398 = vrot.slane %v110, %v397
      %v399 = vmul.f32 %v398, %v385
      %v400 = vmul.f32 %v398, %v388
      %v401 = vmul.f32 %v398, %v391
      %v402 = vmul.f32 %v398, %v394
      %v403 = vmul.f32 %v399, %v378
      %v404 = vmul.f32 %v400, %v378
      %v405 = vmul.f32 %v401, %v378
      %v406 = vmul.f32 %v402, %v378
      %v407 = vsub.f32 %v371, %v403
      %v408 = vsub.f32 %v372, %v404
      %v409 = vsub.f32 %v373, %v405
      %v410 = vsub.f32 %v374, %v406
      %v411 = vlaneseq
      %v412 = vshrl.u32 %v411, 7
      %v413 = vsub.s32 7, %v412
      %v414 = vrot.slane %v72, %v413
      %v415 = vmul.f32 %v407, %v414
      %v416 = vmul.f32 %v408, %v414
      %v417 = vmul.f32 %v409, %v414
      %v418 = vmul.f32 %v410, %v414
      %v419 = vsel %vm78, %v415, 0.0
      %420 = vadd.xlane.f32.xlu0 %v419
      %v421 = vpop.xlane.xlu0 %420
      %v422 = vsel %vm78, %v416, 0.0
      %423 = vadd.xlane.f32.xlu0 %v422
      %v424 = vpop.xlane.xlu0 %423
      %v425 = vsel %vm78, %v417, 0.0
      %426 = vadd.xlane.f32.xlu0 %v425
      %v427 = vpop.xlane.xlu0 %426
      %v428 = vsel %vm78, %v418, 0.0
      %429 = vadd.xlane.f32.xlu0 %v428
      %v430 = vpop.xlane.xlu0 %429
      %v431 = vlaneseq
      %v432 = vshrl.u32 %v431, 7
      %v433 = vsub.s32 7, %v432
      %v434 = vrot.slane %v109, %v433
      %v435 = vmul.f32 %v434, %v421
      %v436 = vmul.f32 %v434, %v424
      %v437 = vmul.f32 %v434, %v427
      %v438 = vmul.f32 %v434, %v430
      %v439 = vmul.f32 %v435, %v414
      %v440 = vmul.f32 %v436, %v414
      %v441 = vmul.f32 %v437, %v414
      %v442 = vmul.f32 %v438, %v414
      %v443 = vsub.f32 %v407, %v439
      %v444 = vsub.f32 %v408, %v440
      %v445 = vsub.f32 %v409, %v441
      %v446 = vsub.f32 %v410, %v442
      %v447 = vlaneseq
      %v448 = vshrl.u32 %v447, 7
      %v449 = vsub.s32 6, %v448
      %v450 = vrot.slane %v72, %v449
      %v451 = vmul.f32 %v443, %v450
      %v452 = vmul.f32 %v444, %v450
      %v453 = vmul.f32 %v445, %v450
      %v454 = vmul.f32 %v446, %v450
      %v455 = vsel %vm78, %v451, 0.0
      %456 = vadd.xlane.f32.xlu0 %v455
      %v457 = vpop.xlane.xlu0 %456
      %v458 = vsel %vm78, %v452, 0.0
      %459 = vadd.xlane.f32.xlu0 %v458
      %v460 = vpop.xlane.xlu0 %459
      %v461 = vsel %vm78, %v453, 0.0
      %462 = vadd.xlane.f32.xlu0 %v461
      %v463 = vpop.xlane.xlu0 %462
      %v464 = vsel %vm78, %v454, 0.0
      %465 = vadd.xlane.f32.xlu0 %v464
      %v466 = vpop.xlane.xlu0 %465
      %v467 = vlaneseq
      %v468 = vshrl.u32 %v467, 7
      %v469 = vsub.s32 6, %v468
      %v470 = vrot.slane %v109, %v469
      %v471 = vmul.f32 %v470, %v457
      %v472 = vmul.f32 %v470, %v460
      %v473 = vmul.f32 %v470, %v463
      %v474 = vmul.f32 %v470, %v466
      %v475 = vmul.f32 %v471, %v450
      %v476 = vmul.f32 %v472, %v450
      %v477 = vmul.f32 %v473, %v450
      %v478 = vmul.f32 %v474, %v450
      %v479 = vsub.f32 %v443, %v475
      %v480 = vsub.f32 %v444, %v476
      %v481 = vsub.f32 %v445, %v477
      %v482 = vsub.f32 %v446, %v478
      %v483 = vlaneseq
      %v484 = vshrl.u32 %v483, 7
      %v485 = vsub.s32 5, %v484
      %v486 = vrot.slane %v72, %v485
      %v487 = vmul.f32 %v479, %v486
      %v488 = vmul.f32 %v480, %v486
      %v489 = vmul.f32 %v481, %v486
      %v490 = vmul.f32 %v482, %v486
      %v491 = vsel %vm78, %v487, 0.0
      %492 = vadd.xlane.f32.xlu0 %v491
      %v493 = vpop.xlane.xlu0 %492
      %v494 = vsel %vm78, %v488, 0.0
      %495 = vadd.xlane.f32.xlu0 %v494
      %v496 = vpop.xlane.xlu0 %495
      %v497 = vsel %vm78, %v489, 0.0
      %498 = vadd.xlane.f32.xlu0 %v497
      %v499 = vpop.xlane.xlu0 %498
      %v500 = vsel %vm78, %v490, 0.0
      %501 = vadd.xlane.f32.xlu0 %v500
      %v502 = vpop.xlane.xlu0 %501
      %v503 = vlaneseq
      %v504 = vshrl.u32 %v503, 7
      %v505 = vsub.s32 5, %v504
      %v506 = vrot.slane %v109, %v505
      %v507 = vmul.f32 %v506, %v493
      %v508 = vmul.f32 %v506, %v496
      %v509 = vmul.f32 %v506, %v499
      %v510 = vmul.f32 %v506, %v502
      %v511 = vmul.f32 %v507, %v486
      %v512 = vmul.f32 %v508, %v486
      %v513 = vmul.f32 %v509, %v486
      %v514 = vmul.f32 %v510, %v486
      %v515 = vsub.f32 %v479, %v511
      %v516 = vsub.f32 %v480, %v512
      %v517 = vsub.f32 %v481, %v513
      %v518 = vsub.f32 %v482, %v514
      %v519 = vlaneseq
      %v520 = vshrl.u32 %v519, 7
      %v521 = vsub.s32 4, %v520
      %v522 = vrot.slane %v72, %v521
      %v523 = vmul.f32 %v515, %v522
      %v524 = vmul.f32 %v516, %v522
      %v525 = vmul.f32 %v517, %v522
      %v526 = vmul.f32 %v518, %v522
      %v527 = vsel %vm78, %v523, 0.0
      %528 = vadd.xlane.f32.xlu0 %v527
      %v529 = vpop.xlane.xlu0 %528
      %v530 = vsel %vm78, %v524, 0.0
      %531 = vadd.xlane.f32.xlu0 %v530
      %v532 = vpop.xlane.xlu0 %531
      %v533 = vsel %vm78, %v525, 0.0
      %534 = vadd.xlane.f32.xlu0 %v533
      %v535 = vpop.xlane.xlu0 %534
      %v536 = vsel %vm78, %v526, 0.0
      %537 = vadd.xlane.f32.xlu0 %v536
      %v538 = vpop.xlane.xlu0 %537
      %v539 = vlaneseq
      %v540 = vshrl.u32 %v539, 7
      %v541 = vsub.s32 4, %v540
      %v542 = vrot.slane %v109, %v541
      %v543 = vmul.f32 %v542, %v529
      %v544 = vmul.f32 %v542, %v532
      %v545 = vmul.f32 %v542, %v535
      %v546 = vmul.f32 %v542, %v538
      %v547 = vmul.f32 %v543, %v522
      %v548 = vmul.f32 %v544, %v522
      %v549 = vmul.f32 %v545, %v522
      %v550 = vmul.f32 %v546, %v522
      %v551 = vsub.f32 %v515, %v547
      %v552 = vsub.f32 %v516, %v548
      %v553 = vsub.f32 %v517, %v549
      %v554 = vsub.f32 %v518, %v550
      %v555 = vlaneseq
      %v556 = vshrl.u32 %v555, 7
      %v557 = vsub.s32 3, %v556
      %v558 = vrot.slane %v72, %v557
      %v559 = vmul.f32 %v551, %v558
      %v560 = vmul.f32 %v552, %v558
      %v561 = vmul.f32 %v553, %v558
      %v562 = vmul.f32 %v554, %v558
      %v563 = vsel %vm78, %v559, 0.0
      %564 = vadd.xlane.f32.xlu0 %v563
      %v565 = vpop.xlane.xlu0 %564
      %v566 = vsel %vm78, %v560, 0.0
      %567 = vadd.xlane.f32.xlu0 %v566
      %v568 = vpop.xlane.xlu0 %567
      %v569 = vsel %vm78, %v561, 0.0
      %570 = vadd.xlane.f32.xlu0 %v569
      %v571 = vpop.xlane.xlu0 %570
      %v572 = vsel %vm78, %v562, 0.0
      %573 = vadd.xlane.f32.xlu0 %v572
      %v574 = vpop.xlane.xlu0 %573
      %v575 = vlaneseq
      %v576 = vshrl.u32 %v575, 7
      %v577 = vsub.s32 3, %v576
      %v578 = vrot.slane %v109, %v577
      %v579 = vmul.f32 %v578, %v565
      %v580 = vmul.f32 %v578, %v568
      %v581 = vmul.f32 %v578, %v571
      %v582 = vmul.f32 %v578, %v574
      %v583 = vmul.f32 %v579, %v558
      %v584 = vmul.f32 %v580, %v558
      %v585 = vmul.f32 %v581, %v558
      %v586 = vmul.f32 %v582, %v558
      %v587 = vsub.f32 %v551, %v583
      %v588 = vsub.f32 %v552, %v584
      %v589 = vsub.f32 %v553, %v585
      %v590 = vsub.f32 %v554, %v586
      %v591 = vlaneseq
      %v592 = vshrl.u32 %v591, 7
      %v593 = vsub.s32 2, %v592
      %v594 = vrot.slane %v72, %v593
      %v595 = vmul.f32 %v587, %v594
      %v596 = vmul.f32 %v588, %v594
      %v597 = vmul.f32 %v589, %v594
      %v598 = vmul.f32 %v590, %v594
      %v599 = vsel %vm78, %v595, 0.0
      %600 = vadd.xlane.f32.xlu0 %v599
      %v601 = vpop.xlane.xlu0 %600
      %v602 = vsel %vm78, %v596, 0.0
      %603 = vadd.xlane.f32.xlu0 %v602
      %v604 = vpop.xlane.xlu0 %603
      %v605 = vsel %vm78, %v597, 0.0
      %606 = vadd.xlane.f32.xlu0 %v605
      %v607 = vpop.xlane.xlu0 %606
      %v608 = vsel %vm78, %v598, 0.0
      %609 = vadd.xlane.f32.xlu0 %v608
      %v610 = vpop.xlane.xlu0 %609
      %v611 = vlaneseq
      %v612 = vshrl.u32 %v611, 7
      %v613 = vsub.s32 2, %v612
      %v614 = vrot.slane %v109, %v613
      %v615 = vmul.f32 %v614, %v601
      %v616 = vmul.f32 %v614, %v604
      %v617 = vmul.f32 %v614, %v607
      %v618 = vmul.f32 %v614, %v610
      %v619 = vmul.f32 %v615, %v594
      %v620 = vmul.f32 %v616, %v594
      %v621 = vmul.f32 %v617, %v594
      %v622 = vmul.f32 %v618, %v594
      %v623 = vsub.f32 %v587, %v619
      %v624 = vsub.f32 %v588, %v620
      %v625 = vsub.f32 %v589, %v621
      %v626 = vsub.f32 %v590, %v622
      %v627 = vlaneseq
      %v628 = vshrl.u32 %v627, 7
      %v629 = vsub.s32 1, %v628
      %v630 = vrot.slane %v72, %v629
      %v631 = vmul.f32 %v623, %v630
      %v632 = vmul.f32 %v624, %v630
      %v633 = vmul.f32 %v625, %v630
      %v634 = vmul.f32 %v626, %v630
      %v635 = vsel %vm78, %v631, 0.0
      %636 = vadd.xlane.f32.xlu0 %v635
      %v637 = vpop.xlane.xlu0 %636
      %v638 = vsel %vm78, %v632, 0.0
      %639 = vadd.xlane.f32.xlu0 %v638
      %v640 = vpop.xlane.xlu0 %639
      %v641 = vsel %vm78, %v633, 0.0
      %642 = vadd.xlane.f32.xlu0 %v641
      %v643 = vpop.xlane.xlu0 %642
      %v644 = vsel %vm78, %v634, 0.0
      %645 = vadd.xlane.f32.xlu0 %v644
      %v646 = vpop.xlane.xlu0 %645
      %v647 = vlaneseq
      %v648 = vshrl.u32 %v647, 7
      %v649 = vsub.s32 1, %v648
      %v650 = vrot.slane %v109, %v649
      %v651 = vmul.f32 %v650, %v637
      %v652 = vmul.f32 %v650, %v640
      %v653 = vmul.f32 %v650, %v643
      %v654 = vmul.f32 %v650, %v646
      %v655 = vmul.f32 %v651, %v630
      %v656 = vmul.f32 %v652, %v630
      %v657 = vmul.f32 %v653, %v630
      %v658 = vmul.f32 %v654, %v630
      %v659 = vsub.f32 %v623, %v655
      %v660 = vsub.f32 %v624, %v656
      %v661 = vsub.f32 %v625, %v657
      %v662 = vsub.f32 %v626, %v658
      %v663 = vlaneseq
      %v664 = vshrl.u32 %v663, 7
      %v665 = vsub.s32 0, %v664
      %v666 = vrot.slane %v72, %v665
      %v667 = vmul.f32 %v659, %v666
      %v668 = vmul.f32 %v660, %v666
      %v669 = vmul.f32 %v661, %v666
      %v670 = vmul.f32 %v662, %v666
      %v671 = vsel %vm78, %v667, 0.0
      %672 = vadd.xlane.f32.xlu0 %v671
      %v673 = vpop.xlane.xlu0 %672
      %v674 = vsel %vm78, %v668, 0.0
      %675 = vadd.xlane.f32.xlu0 %v674
      %v676 = vpop.xlane.xlu0 %675
      %v677 = vsel %vm78, %v669, 0.0
      %678 = vadd.xlane.f32.xlu0 %v677
      %v679 = vpop.xlane.xlu0 %678
      %v680 = vsel %vm78, %v670, 0.0
      %681 = vadd.xlane.f32.xlu0 %v680
      %v682 = vpop.xlane.xlu0 %681
      %v683 = vlaneseq
      %v684 = vshrl.u32 %v683, 7
      %v685 = vsub.s32 0, %v684
      %v686 = vrot.slane %v109, %v685
      %v687 = vmul.f32 %v686, %v673
      %v688 = vmul.f32 %v686, %v676
      %v689 = vmul.f32 %v686, %v679
      %v690 = vmul.f32 %v686, %v682
      %v691 = vmul.f32 %v687, %v666
      %v692 = vmul.f32 %v688, %v666
      %v693 = vmul.f32 %v689, %v666
      %v694 = vmul.f32 %v690, %v666
      %v695 = vsub.f32 %v659, %v691
      %v696 = vsub.f32 %v660, %v692
      %v697 = vsub.f32 %v661, %v693
      %v698 = vsub.f32 %v662, %v694
      %v699 = vlaneseq
      %v700 = vshrl.u32 %v699, 7
      %v701 = vsub.s32 7, %v700
      %v702 = vrot.slane %v71, %v701
      %v703 = vmul.f32 %v695, %v702
      %v704 = vmul.f32 %v696, %v702
      %v705 = vmul.f32 %v697, %v702
      %v706 = vmul.f32 %v698, %v702
      %v707 = vsel %vm78, %v703, 0.0
      %708 = vadd.xlane.f32.xlu0 %v707
      %v709 = vpop.xlane.xlu0 %708
      %v710 = vsel %vm78, %v704, 0.0
      %711 = vadd.xlane.f32.xlu0 %v710
      %v712 = vpop.xlane.xlu0 %711
      %v713 = vsel %vm78, %v705, 0.0
      %714 = vadd.xlane.f32.xlu0 %v713
      %v715 = vpop.xlane.xlu0 %714
      %v716 = vsel %vm78, %v706, 0.0
      %717 = vadd.xlane.f32.xlu0 %v716
      %v718 = vpop.xlane.xlu0 %717
      %v719 = vlaneseq
      %v720 = vshrl.u32 %v719, 7
      %v721 = vsub.s32 7, %v720
      %v722 = vrot.slane %v108, %v721
      %v723 = vmul.f32 %v722, %v709
      %v724 = vmul.f32 %v722, %v712
      %v725 = vmul.f32 %v722, %v715
      %v726 = vmul.f32 %v722, %v718
      %v727 = vmul.f32 %v723, %v702
      %v728 = vmul.f32 %v724, %v702
      %v729 = vmul.f32 %v725, %v702
      %v730 = vmul.f32 %v726, %v702
      %v731 = vsub.f32 %v695, %v727
      %v732 = vsub.f32 %v696, %v728
      %v733 = vsub.f32 %v697, %v729
      %v734 = vsub.f32 %v698, %v730
      %v735 = vlaneseq
      %v736 = vshrl.u32 %v735, 7
      %v737 = vsub.s32 6, %v736
      %v738 = vrot.slane %v71, %v737
      %v739 = vmul.f32 %v731, %v738
      %v740 = vmul.f32 %v732, %v738
      %v741 = vmul.f32 %v733, %v738
      %v742 = vmul.f32 %v734, %v738
      %v743 = vsel %vm78, %v739, 0.0
      %744 = vadd.xlane.f32.xlu0 %v743
      %v745 = vpop.xlane.xlu0 %744
      %v746 = vsel %vm78, %v740, 0.0
      %747 = vadd.xlane.f32.xlu0 %v746
      %v748 = vpop.xlane.xlu0 %747
      %v749 = vsel %vm78, %v741, 0.0
      %750 = vadd.xlane.f32.xlu0 %v749
      %v751 = vpop.xlane.xlu0 %750
      %v752 = vsel %vm78, %v742, 0.0
      %753 = vadd.xlane.f32.xlu0 %v752
      %v754 = vpop.xlane.xlu0 %753
      %v755 = vlaneseq
      %v756 = vshrl.u32 %v755, 7
      %v757 = vsub.s32 6, %v756
      %v758 = vrot.slane %v108, %v757
      %v759 = vmul.f32 %v758, %v745
      %v760 = vmul.f32 %v758, %v748
      %v761 = vmul.f32 %v758, %v751
      %v762 = vmul.f32 %v758, %v754
      %v763 = vmul.f32 %v759, %v738
      %v764 = vmul.f32 %v760, %v738
      %v765 = vmul.f32 %v761, %v738
      %v766 = vmul.f32 %v762, %v738
      %v767 = vsub.f32 %v731, %v763
      %v768 = vsub.f32 %v732, %v764
      %v769 = vsub.f32 %v733, %v765
      %v770 = vsub.f32 %v734, %v766
      %v771 = vlaneseq
      %v772 = vshrl.u32 %v771, 7
      %v773 = vsub.s32 5, %v772
      %v774 = vrot.slane %v71, %v773
      %v775 = vmul.f32 %v767, %v774
      %v776 = vmul.f32 %v768, %v774
      %v777 = vmul.f32 %v769, %v774
      %v778 = vmul.f32 %v770, %v774
      %v779 = vsel %vm78, %v775, 0.0
      %780 = vadd.xlane.f32.xlu0 %v779
      %v781 = vpop.xlane.xlu0 %780
      %v782 = vsel %vm78, %v776, 0.0
      %783 = vadd.xlane.f32.xlu0 %v782
      %v784 = vpop.xlane.xlu0 %783
      %v785 = vsel %vm78, %v777, 0.0
      %786 = vadd.xlane.f32.xlu0 %v785
      %v787 = vpop.xlane.xlu0 %786
      %v788 = vsel %vm78, %v778, 0.0
      %789 = vadd.xlane.f32.xlu0 %v788
      %v790 = vpop.xlane.xlu0 %789
      %v791 = vlaneseq
      %v792 = vshrl.u32 %v791, 7
      %v793 = vsub.s32 5, %v792
      %v794 = vrot.slane %v108, %v793
      %v795 = vmul.f32 %v794, %v781
      %v796 = vmul.f32 %v794, %v784
      %v797 = vmul.f32 %v794, %v787
      %v798 = vmul.f32 %v794, %v790
      %v799 = vmul.f32 %v795, %v774
      %v800 = vmul.f32 %v796, %v774
      %v801 = vmul.f32 %v797, %v774
      %v802 = vmul.f32 %v798, %v774
      %v803 = vsub.f32 %v767, %v799
      %v804 = vsub.f32 %v768, %v800
      %v805 = vsub.f32 %v769, %v801
      %v806 = vsub.f32 %v770, %v802
      %v807 = vlaneseq
      %v808 = vshrl.u32 %v807, 7
      %v809 = vsub.s32 4, %v808
      %v810 = vrot.slane %v71, %v809
      %v811 = vmul.f32 %v803, %v810
      %v812 = vmul.f32 %v804, %v810
      %v813 = vmul.f32 %v805, %v810
      %v814 = vmul.f32 %v806, %v810
      %v815 = vsel %vm78, %v811, 0.0
      %816 = vadd.xlane.f32.xlu0 %v815
      %v817 = vpop.xlane.xlu0 %816
      %v818 = vsel %vm78, %v812, 0.0
      %819 = vadd.xlane.f32.xlu0 %v818
      %v820 = vpop.xlane.xlu0 %819
      %v821 = vsel %vm78, %v813, 0.0
      %822 = vadd.xlane.f32.xlu0 %v821
      %v823 = vpop.xlane.xlu0 %822
      %v824 = vsel %vm78, %v814, 0.0
      %825 = vadd.xlane.f32.xlu0 %v824
      %v826 = vpop.xlane.xlu0 %825
      %v827 = vlaneseq
      %v828 = vshrl.u32 %v827, 7
      %v829 = vsub.s32 4, %v828
      %v830 = vrot.slane %v108, %v829
      %v831 = vmul.f32 %v830, %v817
      %v832 = vmul.f32 %v830, %v820
      %v833 = vmul.f32 %v830, %v823
      %v834 = vmul.f32 %v830, %v826
      %v835 = vmul.f32 %v831, %v810
      %v836 = vmul.f32 %v832, %v810
      %v837 = vmul.f32 %v833, %v810
      %v838 = vmul.f32 %v834, %v810
      %v839 = vsub.f32 %v803, %v835
      %v840 = vsub.f32 %v804, %v836
      %v841 = vsub.f32 %v805, %v837
      %v842 = vsub.f32 %v806, %v838
      %v843 = vlaneseq
      %v844 = vshrl.u32 %v843, 7
      %v845 = vsub.s32 3, %v844
      %v846 = vrot.slane %v71, %v845
      %v847 = vmul.f32 %v839, %v846
      %v848 = vmul.f32 %v840, %v846
      %v849 = vmul.f32 %v841, %v846
      %v850 = vmul.f32 %v842, %v846
      %v851 = vsel %vm78, %v847, 0.0
      %852 = vadd.xlane.f32.xlu0 %v851
      %v853 = vpop.xlane.xlu0 %852
      %v854 = vsel %vm78, %v848, 0.0
      %855 = vadd.xlane.f32.xlu0 %v854
      %v856 = vpop.xlane.xlu0 %855
      %v857 = vsel %vm78, %v849, 0.0
      %858 = vadd.xlane.f32.xlu0 %v857
      %v859 = vpop.xlane.xlu0 %858
      %v860 = vsel %vm78, %v850, 0.0
      %861 = vadd.xlane.f32.xlu0 %v860
      %v862 = vpop.xlane.xlu0 %861
      %v863 = vlaneseq
      %v864 = vshrl.u32 %v863, 7
      %v865 = vsub.s32 3, %v864
      %v866 = vrot.slane %v108, %v865
      %v867 = vmul.f32 %v866, %v853
      %v868 = vmul.f32 %v866, %v856
      %v869 = vmul.f32 %v866, %v859
      %v870 = vmul.f32 %v866, %v862
      %v871 = vmul.f32 %v867, %v846
      %v872 = vmul.f32 %v868, %v846
      %v873 = vmul.f32 %v869, %v846
      %v874 = vmul.f32 %v870, %v846
      %v875 = vsub.f32 %v839, %v871
      %v876 = vsub.f32 %v840, %v872
      %v877 = vsub.f32 %v841, %v873
      %v878 = vsub.f32 %v842, %v874
      %v879 = vlaneseq
      %v880 = vshrl.u32 %v879, 7
      %v881 = vsub.s32 2, %v880
      %v882 = vrot.slane %v71, %v881
      %v883 = vmul.f32 %v875, %v882
      %v884 = vmul.f32 %v876, %v882
      %v885 = vmul.f32 %v877, %v882
      %v886 = vmul.f32 %v878, %v882
      %v887 = vsel %vm78, %v883, 0.0
      %888 = vadd.xlane.f32.xlu0 %v887
      %v889 = vpop.xlane.xlu0 %888
      %v890 = vsel %vm78, %v884, 0.0
      %891 = vadd.xlane.f32.xlu0 %v890
      %v892 = vpop.xlane.xlu0 %891
      %v893 = vsel %vm78, %v885, 0.0
      %894 = vadd.xlane.f32.xlu0 %v893
      %v895 = vpop.xlane.xlu0 %894
      %v896 = vsel %vm78, %v886, 0.0
      %897 = vadd.xlane.f32.xlu0 %v896
      %v898 = vpop.xlane.xlu0 %897
      %v899 = vlaneseq
      %v900 = vshrl.u32 %v899, 7
      %v901 = vsub.s32 2, %v900
      %v902 = vrot.slane %v108, %v901
      %v903 = vmul.f32 %v902, %v889
      %v904 = vmul.f32 %v902, %v892
      %v905 = vmul.f32 %v902, %v895
      %v906 = vmul.f32 %v902, %v898
      %v907 = vmul.f32 %v903, %v882
      %v908 = vmul.f32 %v904, %v882
      %v909 = vmul.f32 %v905, %v882
      %v910 = vmul.f32 %v906, %v882
      %v911 = vsub.f32 %v875, %v907
      %v912 = vsub.f32 %v876, %v908
      %v913 = vsub.f32 %v877, %v909
      %v914 = vsub.f32 %v878, %v910
      %v915 = vlaneseq
      %v916 = vshrl.u32 %v915, 7
      %v917 = vsub.s32 1, %v916
      %v918 = vrot.slane %v71, %v917
      %v919 = vmul.f32 %v911, %v918
      %v920 = vmul.f32 %v912, %v918
      %v921 = vmul.f32 %v913, %v918
      %v922 = vmul.f32 %v914, %v918
      %v923 = vsel %vm78, %v919, 0.0
      %924 = vadd.xlane.f32.xlu0 %v923
      %v925 = vpop.xlane.xlu0 %924
      %v926 = vsel %vm78, %v920, 0.0
      %927 = vadd.xlane.f32.xlu0 %v926
      %v928 = vpop.xlane.xlu0 %927
      %v929 = vsel %vm78, %v921, 0.0
      %930 = vadd.xlane.f32.xlu0 %v929
      %v931 = vpop.xlane.xlu0 %930
      %v932 = vsel %vm78, %v922, 0.0
      %933 = vadd.xlane.f32.xlu0 %v932
      %v934 = vpop.xlane.xlu0 %933
      %v935 = vlaneseq
      %v936 = vshrl.u32 %v935, 7
      %v937 = vsub.s32 1, %v936
      %v938 = vrot.slane %v108, %v937
      %v939 = vmul.f32 %v938, %v925
      %v940 = vmul.f32 %v938, %v928
      %v941 = vmul.f32 %v938, %v931
      %v942 = vmul.f32 %v938, %v934
      %v943 = vmul.f32 %v939, %v918
      %v944 = vmul.f32 %v940, %v918
      %v945 = vmul.f32 %v941, %v918
      %v946 = vmul.f32 %v942, %v918
      %v947 = vsub.f32 %v911, %v943
      %v948 = vsub.f32 %v912, %v944
      %v949 = vsub.f32 %v913, %v945
      %v950 = vsub.f32 %v914, %v946
      %v951 = vlaneseq
      %v952 = vshrl.u32 %v951, 7
      %v953 = vsub.s32 0, %v952
      %v954 = vrot.slane %v71, %v953
      %v955 = vmul.f32 %v947, %v954
      %v956 = vmul.f32 %v948, %v954
      %v957 = vmul.f32 %v949, %v954
      %v958 = vmul.f32 %v950, %v954
      %v959 = vsel %vm78, %v955, 0.0
      %960 = vadd.xlane.f32.xlu0 %v959
      %v961 = vpop.xlane.xlu0 %960
      %v962 = vsel %vm78, %v956, 0.0
      %963 = vadd.xlane.f32.xlu0 %v962
      %v964 = vpop.xlane.xlu0 %963
      %v965 = vsel %vm78, %v957, 0.0
      %966 = vadd.xlane.f32.xlu0 %v965
      %v967 = vpop.xlane.xlu0 %966
      %v968 = vsel %vm78, %v958, 0.0
      %969 = vadd.xlane.f32.xlu0 %v968
      %v970 = vpop.xlane.xlu0 %969
      %v971 = vlaneseq
      %v972 = vshrl.u32 %v971, 7
      %v973 = vsub.s32 0, %v972
      %v974 = vrot.slane %v108, %v973
      %v975 = vmul.f32 %v974, %v961
      %v976 = vmul.f32 %v974, %v964
      %v977 = vmul.f32 %v974, %v967
      %v978 = vmul.f32 %v974, %v970
      %v979 = vmul.f32 %v975, %v954
      %v980 = vmul.f32 %v976, %v954
      %v981 = vmul.f32 %v977, %v954
      %v982 = vmul.f32 %v978, %v954
      %v983 = vsub.f32 %v947, %v979
      %v984 = vsub.f32 %v948, %v980
      %v985 = vsub.f32 %v949, %v981
      %v986 = vsub.f32 %v950, %v982
      %v987 = vlaneseq
      %v988 = vshrl.u32 %v987, 7
      %v989 = vsub.s32 7, %v988
      %v990 = vrot.slane %v70, %v989
      %v991 = vmul.f32 %v983, %v990
      %v992 = vmul.f32 %v984, %v990
      %v993 = vmul.f32 %v985, %v990
      %v994 = vmul.f32 %v986, %v990
      %v995 = vsel %vm78, %v991, 0.0
      %996 = vadd.xlane.f32.xlu0 %v995
      %v997 = vpop.xlane.xlu0 %996
      %v998 = vsel %vm78, %v992, 0.0
      %999 = vadd.xlane.f32.xlu0 %v998
      %v1000 = vpop.xlane.xlu0 %999
      %v1001 = vsel %vm78, %v993, 0.0
      %1002 = vadd.xlane.f32.xlu0 %v1001
      %v1003 = vpop.xlane.xlu0 %1002
      %v1004 = vsel %vm78, %v994, 0.0
      %1005 = vadd.xlane.f32.xlu0 %v1004
      %v1006 = vpop.xlane.xlu0 %1005
      %v1007 = vlaneseq
      %v1008 = vshrl.u32 %v1007, 7
      %v1009 = vsub.s32 7, %v1008
      %v1010 = vrot.slane %v107, %v1009
      %v1011 = vmul.f32 %v1010, %v997
      %v1012 = vmul.f32 %v1010, %v1000
      %v1013 = vmul.f32 %v1010, %v1003
      %v1014 = vmul.f32 %v1010, %v1006
      %v1015 = vmul.f32 %v1011, %v990
      %v1016 = vmul.f32 %v1012, %v990
      %v1017 = vmul.f32 %v1013, %v990
      %v1018 = vmul.f32 %v1014, %v990
      %v1019 = vsub.f32 %v983, %v1015
      %v1020 = vsub.f32 %v984, %v1016
      %v1021 = vsub.f32 %v985, %v1017
      %v1022 = vsub.f32 %v986, %v1018
      %v1023 = vlaneseq
      %v1024 = vshrl.u32 %v1023, 7
      %v1025 = vsub.s32 6, %v1024
      %v1026 = vrot.slane %v70, %v1025
      %v1027 = vmul.f32 %v1019, %v1026
      %v1028 = vmul.f32 %v1020, %v1026
      %v1029 = vmul.f32 %v1021, %v1026
      %v1030 = vmul.f32 %v1022, %v1026
      %v1031 = vsel %vm78, %v1027, 0.0
      %1032 = vadd.xlane.f32.xlu0 %v1031
      %v1033 = vpop.xlane.xlu0 %1032
      %v1034 = vsel %vm78, %v1028, 0.0
      %1035 = vadd.xlane.f32.xlu0 %v1034
      %v1036 = vpop.xlane.xlu0 %1035
      %v1037 = vsel %vm78, %v1029, 0.0
      %1038 = vadd.xlane.f32.xlu0 %v1037
      %v1039 = vpop.xlane.xlu0 %1038
      %v1040 = vsel %vm78, %v1030, 0.0
      %1041 = vadd.xlane.f32.xlu0 %v1040
      %v1042 = vpop.xlane.xlu0 %1041
      %v1043 = vlaneseq
      %v1044 = vshrl.u32 %v1043, 7
      %v1045 = vsub.s32 6, %v1044
      %v1046 = vrot.slane %v107, %v1045
      %v1047 = vmul.f32 %v1046, %v1033
      %v1048 = vmul.f32 %v1046, %v1036
      %v1049 = vmul.f32 %v1046, %v1039
      %v1050 = vmul.f32 %v1046, %v1042
      %v1051 = vmul.f32 %v1047, %v1026
      %v1052 = vmul.f32 %v1048, %v1026
      %v1053 = vmul.f32 %v1049, %v1026
      %v1054 = vmul.f32 %v1050, %v1026
      %v1055 = vsub.f32 %v1019, %v1051
      %v1056 = vsub.f32 %v1020, %v1052
      %v1057 = vsub.f32 %v1021, %v1053
      %v1058 = vsub.f32 %v1022, %v1054
      %v1059 = vlaneseq
      %v1060 = vshrl.u32 %v1059, 7
      %v1061 = vsub.s32 5, %v1060
      %v1062 = vrot.slane %v70, %v1061
      %v1063 = vmul.f32 %v1055, %v1062
      %v1064 = vmul.f32 %v1056, %v1062
      %v1065 = vmul.f32 %v1057, %v1062
      %v1066 = vmul.f32 %v1058, %v1062
      %v1067 = vsel %vm78, %v1063, 0.0
      %1068 = vadd.xlane.f32.xlu0 %v1067
      %v1069 = vpop.xlane.xlu0 %1068
      %v1070 = vsel %vm78, %v1064, 0.0
      %1071 = vadd.xlane.f32.xlu0 %v1070
      %v1072 = vpop.xlane.xlu0 %1071
      %v1073 = vsel %vm78, %v1065, 0.0
      %1074 = vadd.xlane.f32.xlu0 %v1073
      %v1075 = vpop.xlane.xlu0 %1074
      %v1076 = vsel %vm78, %v1066, 0.0
      %1077 = vadd.xlane.f32.xlu0 %v1076
      %v1078 = vpop.xlane.xlu0 %1077
      %v1079 = vlaneseq
      %v1080 = vshrl.u32 %v1079, 7
      %v1081 = vsub.s32 5, %v1080
      %v1082 = vrot.slane %v107, %v1081
      %v1083 = vmul.f32 %v1082, %v1069
      %v1084 = vmul.f32 %v1082, %v1072
      %v1085 = vmul.f32 %v1082, %v1075
      %v1086 = vmul.f32 %v1082, %v1078
      %v1087 = vmul.f32 %v1083, %v1062
      %v1088 = vmul.f32 %v1084, %v1062
      %v1089 = vmul.f32 %v1085, %v1062
      %v1090 = vmul.f32 %v1086, %v1062
      %v1091 = vsub.f32 %v1055, %v1087
      %v1092 = vsub.f32 %v1056, %v1088
      %v1093 = vsub.f32 %v1057, %v1089
      %v1094 = vsub.f32 %v1058, %v1090
      %v1095 = vlaneseq
      %v1096 = vshrl.u32 %v1095, 7
      %v1097 = vsub.s32 4, %v1096
      %v1098 = vrot.slane %v70, %v1097
      %v1099 = vmul.f32 %v1091, %v1098
      %v1100 = vmul.f32 %v1092, %v1098
      %v1101 = vmul.f32 %v1093, %v1098
      %v1102 = vmul.f32 %v1094, %v1098
      %v1103 = vsel %vm78, %v1099, 0.0
      %1104 = vadd.xlane.f32.xlu0 %v1103
      %v1105 = vpop.xlane.xlu0 %1104
      %v1106 = vsel %vm78, %v1100, 0.0
      %1107 = vadd.xlane.f32.xlu0 %v1106
      %v1108 = vpop.xlane.xlu0 %1107
      %v1109 = vsel %vm78, %v1101, 0.0
      %1110 = vadd.xlane.f32.xlu0 %v1109
      %v1111 = vpop.xlane.xlu0 %1110
      %v1112 = vsel %vm78, %v1102, 0.0
      %1113 = vadd.xlane.f32.xlu0 %v1112
      %v1114 = vpop.xlane.xlu0 %1113
      %v1115 = vlaneseq
      %v1116 = vshrl.u32 %v1115, 7
      %v1117 = vsub.s32 4, %v1116
      %v1118 = vrot.slane %v107, %v1117
      %v1119 = vmul.f32 %v1118, %v1105
      %v1120 = vmul.f32 %v1118, %v1108
      %v1121 = vmul.f32 %v1118, %v1111
      %v1122 = vmul.f32 %v1118, %v1114
      %v1123 = vmul.f32 %v1119, %v1098
      %v1124 = vmul.f32 %v1120, %v1098
      %v1125 = vmul.f32 %v1121, %v1098
      %v1126 = vmul.f32 %v1122, %v1098
      %v1127 = vsub.f32 %v1091, %v1123
      %v1128 = vsub.f32 %v1092, %v1124
      %v1129 = vsub.f32 %v1093, %v1125
      %v1130 = vsub.f32 %v1094, %v1126
      %v1131 = vlaneseq
      %v1132 = vshrl.u32 %v1131, 7
      %v1133 = vsub.s32 3, %v1132
      %v1134 = vrot.slane %v70, %v1133
      %v1135 = vmul.f32 %v1127, %v1134
      %v1136 = vmul.f32 %v1128, %v1134
      %v1137 = vmul.f32 %v1129, %v1134
      %v1138 = vmul.f32 %v1130, %v1134
      %v1139 = vsel %vm78, %v1135, 0.0
      %1140 = vadd.xlane.f32.xlu0 %v1139
      %v1141 = vpop.xlane.xlu0 %1140
      %v1142 = vsel %vm78, %v1136, 0.0
      %1143 = vadd.xlane.f32.xlu0 %v1142
      %v1144 = vpop.xlane.xlu0 %1143
      %v1145 = vsel %vm78, %v1137, 0.0
      %1146 = vadd.xlane.f32.xlu0 %v1145
      %v1147 = vpop.xlane.xlu0 %1146
      %v1148 = vsel %vm78, %v1138, 0.0
      %1149 = vadd.xlane.f32.xlu0 %v1148
      %v1150 = vpop.xlane.xlu0 %1149
      %v1151 = vlaneseq
      %v1152 = vshrl.u32 %v1151, 7
      %v1153 = vsub.s32 3, %v1152
      %v1154 = vrot.slane %v107, %v1153
      %v1155 = vmul.f32 %v1154, %v1141
      %v1156 = vmul.f32 %v1154, %v1144
      %v1157 = vmul.f32 %v1154, %v1147
      %v1158 = vmul.f32 %v1154, %v1150
      %v1159 = vmul.f32 %v1155, %v1134
      %v1160 = vmul.f32 %v1156, %v1134
      %v1161 = vmul.f32 %v1157, %v1134
      %v1162 = vmul.f32 %v1158, %v1134
      %v1163 = vsub.f32 %v1127, %v1159
      %v1164 = vsub.f32 %v1128, %v1160
      %v1165 = vsub.f32 %v1129, %v1161
      %v1166 = vsub.f32 %v1130, %v1162
      %v1167 = vlaneseq
      %v1168 = vshrl.u32 %v1167, 7
      %v1169 = vsub.s32 2, %v1168
      %v1170 = vrot.slane %v70, %v1169
      %v1171 = vmul.f32 %v1163, %v1170
      %v1172 = vmul.f32 %v1164, %v1170
      %v1173 = vmul.f32 %v1165, %v1170
      %v1174 = vmul.f32 %v1166, %v1170
      %v1175 = vsel %vm78, %v1171, 0.0
      %1176 = vadd.xlane.f32.xlu0 %v1175
      %v1177 = vpop.xlane.xlu0 %1176
      %v1178 = vsel %vm78, %v1172, 0.0
      %1179 = vadd.xlane.f32.xlu0 %v1178
      %v1180 = vpop.xlane.xlu0 %1179
      %v1181 = vsel %vm78, %v1173, 0.0
      %1182 = vadd.xlane.f32.xlu0 %v1181
      %v1183 = vpop.xlane.xlu0 %1182
      %v1184 = vsel %vm78, %v1174, 0.0
      %1185 = vadd.xlane.f32.xlu0 %v1184
      %v1186 = vpop.xlane.xlu0 %1185
      %v1187 = vlaneseq
      %v1188 = vshrl.u32 %v1187, 7
      %v1189 = vsub.s32 2, %v1188
      %v1190 = vrot.slane %v107, %v1189
      %v1191 = vmul.f32 %v1190, %v1177
      %v1192 = vmul.f32 %v1190, %v1180
      %v1193 = vmul.f32 %v1190, %v1183
      %v1194 = vmul.f32 %v1190, %v1186
      %v1195 = vmul.f32 %v1191, %v1170
      %v1196 = vmul.f32 %v1192, %v1170
      %v1197 = vmul.f32 %v1193, %v1170
      %v1198 = vmul.f32 %v1194, %v1170
      %v1199 = vsub.f32 %v1163, %v1195
      %v1200 = vsub.f32 %v1164, %v1196
      %v1201 = vsub.f32 %v1165, %v1197
      %v1202 = vsub.f32 %v1166, %v1198
      %v1203 = vlaneseq
      %v1204 = vshrl.u32 %v1203, 7
      %v1205 = vsub.s32 1, %v1204
      %v1206 = vrot.slane %v70, %v1205
      %v1207 = vmul.f32 %v1199, %v1206
      %v1208 = vmul.f32 %v1200, %v1206
      %v1209 = vmul.f32 %v1201, %v1206
      %v1210 = vmul.f32 %v1202, %v1206
      %v1211 = vsel %vm78, %v1207, 0.0
      %1212 = vadd.xlane.f32.xlu0 %v1211
      %v1213 = vpop.xlane.xlu0 %1212
      %v1214 = vsel %vm78, %v1208, 0.0
      %1215 = vadd.xlane.f32.xlu0 %v1214
      %v1216 = vpop.xlane.xlu0 %1215
      %v1217 = vsel %vm78, %v1209, 0.0
      %1218 = vadd.xlane.f32.xlu0 %v1217
      %v1219 = vpop.xlane.xlu0 %1218
      %v1220 = vsel %vm78, %v1210, 0.0
      %1221 = vadd.xlane.f32.xlu0 %v1220
      %v1222 = vpop.xlane.xlu0 %1221
      %v1223 = vlaneseq
      %v1224 = vshrl.u32 %v1223, 7
      %v1225 = vsub.s32 1, %v1224
      %v1226 = vrot.slane %v107, %v1225
      %v1227 = vmul.f32 %v1226, %v1213
      %v1228 = vmul.f32 %v1226, %v1216
      %v1229 = vmul.f32 %v1226, %v1219
      %v1230 = vmul.f32 %v1226, %v1222
      %v1231 = vmul.f32 %v1227, %v1206
      %v1232 = vmul.f32 %v1228, %v1206
      %v1233 = vmul.f32 %v1229, %v1206
      %v1234 = vmul.f32 %v1230, %v1206
      %v1235 = vsub.f32 %v1199, %v1231
      %v1236 = vsub.f32 %v1200, %v1232
      %v1237 = vsub.f32 %v1201, %v1233
      %v1238 = vsub.f32 %v1202, %v1234
      %v1239 = vlaneseq
      %v1240 = vshrl.u32 %v1239, 7
      %v1241 = vsub.s32 0, %v1240
      %v1242 = vrot.slane %v70, %v1241
      %v1243 = vmul.f32 %v1235, %v1242
      %v1244 = vmul.f32 %v1236, %v1242
      %v1245 = vmul.f32 %v1237, %v1242
      %v1246 = vmul.f32 %v1238, %v1242
      %v1247 = vsel %vm78, %v1243, 0.0
      %1248 = vadd.xlane.f32.xlu0 %v1247
      %v1249 = vpop.xlane.xlu0 %1248
      %v1250 = vsel %vm78, %v1244, 0.0
      %1251 = vadd.xlane.f32.xlu0 %v1250
      %v1252 = vpop.xlane.xlu0 %1251
      %v1253 = vsel %vm78, %v1245, 0.0
      %1254 = vadd.xlane.f32.xlu0 %v1253
      %v1255 = vpop.xlane.xlu0 %1254
      %v1256 = vsel %vm78, %v1246, 0.0
      %1257 = vadd.xlane.f32.xlu0 %v1256
      %v1258 = vpop.xlane.xlu0 %1257
      %v1259 = vlaneseq
      %v1260 = vshrl.u32 %v1259, 7
      %v1261 = vsub.s32 0, %v1260
      %v1262 = vrot.slane %v107, %v1261
      %v1263 = vmul.f32 %v1262, %v1249
      %v1264 = vmul.f32 %v1262, %v1252
      %v1265 = vmul.f32 %v1262, %v1255
      %v1266 = vmul.f32 %v1262, %v1258
      %v1267 = vmul.f32 %v1263, %v1242
      %v1268 = vmul.f32 %v1264, %v1242
      %v1269 = vmul.f32 %v1265, %v1242
      %v1270 = vmul.f32 %v1266, %v1242
      %v1271 = vsub.f32 %v1235, %v1267
      %v1272 = vsub.f32 %v1236, %v1268
      %v1273 = vsub.f32 %v1237, %v1269
      %v1274 = vsub.f32 %v1238, %v1270
      %1275 = vst.msk [vmem:[#allocation2] sm:$0xff] %vm78, %v1271
      %1276 = vst.msk [vmem:[#allocation2 + $0x8] sm:$0xff] %vm78, %v1272
      %1277 = vst.msk [vmem:[#allocation2 + $0x10] sm:$0xff] %vm78, %v1273
      %1278 = vst.msk [vmem:[#allocation2 + $0x18] sm:$0xff] %vm78, %v1274
    $region21: #{tpu_custom_call.1} parent=1 // pred_fallthru
      _
    %v1279 = vld [vmem:[#allocation6] sm:$0xff]
    %v1280 = vld [vmem:[#allocation2] sm:$0xff]
    %v1281 = vld [vmem:[#allocation2 + $0x8] sm:$0xff]
    %v1282 = vld [vmem:[#allocation2 + $0x10] sm:$0xff]
    %v1283 = vld [vmem:[#allocation2 + $0x18] sm:$0xff]
    %vm1284 = vcmask 261120
    %v1286 = vsel %vm1284, %v1279, 0
    %1288 = vmatprep.subr.mxu0 0.0
    %1289 = vmatpush1.msra.mxu0 %v1280
    %1290 = vmatprep.subr.mxu0 0.0
    %1291 = vmatpush1.msra.mxu0 %v1281
    %1292 = vmatprep.subr.mxu0 0.0
    %1293 = vmatpush1.msra.mxu0 %v1282
    %1294 = vmatprep.subr.mxu0 0.0
    %1295 = vmatpush1.msra.mxu0 %v1283
    %1296 = vmatprep.subr.mxu0 0.0
    %1297 = vmatpush1.msra.mxu0 0.0
    %1298 = vmatprep.subr.mxu0 0.0
    %1299 = vmatpush1.msra.mxu0 0.0
    %1300 = vmatprep.subr.mxu0 0.0
    %1301 = vmatpush1.msra.mxu0 0.0
    %1302 = vmatprep.subr.mxu0 0.0
    %1303 = vmatpush1.msra.mxu0 0.0
    %1304 = vmatprep.subr.mxu0 0.0
    %1305 = vmatpush1.msra.mxu0 0.0
    %1306 = vmatprep.subr.mxu0 0.0
    %1307 = vmatpush1.msra.mxu0 0.0
    %1308 = vmatprep.subr.mxu0 0.0
    %1309 = vmatpush1.msra.mxu0 0.0
    %1310 = vmatprep.subr.mxu0 0.0
    %1311 = vmatpush1.msra.mxu0 0.0
    %1312 = vmatprep.subr.mxu0 0.0
    %1313 = vmatpush1.msra.mxu0 0.0
    %1314 = vmatprep.subr.mxu0 0.0
    %1315 = vmatpush1.msra.mxu0 0.0
    %1316 = vmatprep.subr.mxu0 0.0
    %1317 = vmatpush1.msra.mxu0 0.0
    %1318 = vmatprep.subr.mxu0 0.0
    %1319 = vmatpush1.msra.mxu0 0.0
    %1320 = vmatprep.subr.mxu0 0.0
    %1321 = vmatpush1.msra.mxu0 0.0
    %1322 = vmatprep.subr.mxu0 0.0
    %1323 = vmatpush1.msra.mxu0 0.0
    %1324 = vmatprep.subr.mxu0 0.0
    %1325 = vmatpush1.msra.mxu0 0.0
    %1326 = vmatprep.subr.mxu0 0.0
    %1327 = vmatpush1.msra.mxu0 0.0
    %1328 = vmatprep.subr.mxu0 0.0
    %1329 = vmatpush1.msra.mxu0 0.0
    %1330 = vmatprep.subr.mxu0 0.0
    %1331 = vmatpush1.msra.mxu0 0.0
    %1332 = vmatprep.subr.mxu0 0.0
    %1333 = vmatpush1.msra.mxu0 0.0
    %1334 = vmatprep.subr.mxu0 0.0
    %1335 = vmatpush1.msra.mxu0 0.0
    %1336 = vmatprep.subr.mxu0 0.0
    %1337 = vmatpush1.msra.mxu0 0.0
    %1338 = vmatprep.subr.mxu0 0.0
    %1339 = vmatpush1.msra.mxu0 0.0
    %1340 = vmatprep.subr.mxu0 0.0
    %1341 = vmatpush1.msra.mxu0 0.0
    %1342 = vmatprep.subr.mxu0 0.0
    %1343 = vmatpush1.msra.mxu0 0.0
    %1344 = vmatprep.subr.mxu0 0.0
    %1345 = vmatpush1.msra.mxu0 0.0
    %1346 = vmatprep.subr.mxu0 0.0
    %1347 = vmatpush1.msra.mxu0 0.0
    %1348 = vmatprep.subr.mxu0 0.0
    %1349 = vmatpush1.msra.mxu0 0.0
    %1350 = vmatprep.subr.mxu0 0.0
    %1351 = vmatpush1.msra.mxu0 0.0
    %1352 = vmatprep.mubr.f32.mxu0 0.0
    %1353 = vmatmul.mubr.f32.gmra.mrb[0].mxu0 %v1286
    %v1354 = vpop.f32.mrb[0].mxu0
    %v1355 = vadd.f32 0.0, %v1354
    %v1356 = vpop.f32.mrb[0].mxu0
    %1357 = vdwg.mxu0
    %1358 = vst.msk [vmem:[#allocation8] sm:$0xff] %vm1284, %v1355
    // Predicated region
    $region22: #{tpu_custom_call.1} parent=1 // pred_check
      _
    $region23: #{tpu_custom_call.1} parent=1 // pred_check_branch
      %1360 = sbr.rel (0) target = $region25
    $region24: #{tpu_custom_call.1} parent=1 // pred_region
      %s1362 = ssub.s32 128, 128
      %1363 = vsyncadd [#allocation5], %s1362
      %s1365 = sshll.u32 [#allocation8], 4
      %s1366 = int_to_ptr.vmem [resolvable:$true] %s1365
      %1368 = dma.vmem_to_hbm [thread:$0]  %s1366, 128, %s2, [#allocation5]
    $region25: #{tpu_custom_call.1} parent=1 // pred_fallthru
      _
    // Predicated region
    $region26: #{tpu_custom_call.1} parent=1 // pred_check
      _
    $region27: #{tpu_custom_call.1} parent=1 // pred_check_branch
      %1370 = sbr.rel (0) target = $region29
    $region28: #{tpu_custom_call.1} parent=1 // pred_region
      %1371 = dma.done [#allocation5], 128
    $region29: #{tpu_custom_call.1} parent=1 // pred_fallthru
      _
    %1372 = vsyncpa [#allocation4], 1
    %1373 = vsyncpa [#allocation7], 1
    %1374 = vsyncpa [#allocation5], 1

</llo_original>
